<compile_context>
chip_gen: v7x
topology: tpu7x:2x2x1
jax: 0.10.0
libtpu: 0.0.40
codegen_flags: <defaults>
</compile_context>

<pallas_src>
import functools

import jax
import jax.numpy as jnp
from jax.experimental import pallas as pl
from jax.experimental.pallas import tpu as pltpu


def _scalseq_kernel(*refs, has_conv0):
    """One (image, S-tile) step: native-res branches + head + 2-stage up + max."""
    if has_conv0:
        (x3_ref, x4_ref, x5_ref, u4_ref, u5_ref,
         w0_ref, b0_ref, w1_ref, b1_ref, w2_ref, b2_ref,
         w3_ref, b3_ref, o_ref) = refs
    else:
        (x3_ref, x4_ref, x5_ref, u4_ref, u5_ref,
         w1_ref, b1_ref, w2_ref, b2_ref,
         w3_ref, b3_ref, o_ref) = refs

    f32, bf16 = jnp.float32, jnp.bfloat16
    w3 = w3_ref[...]                        # (C, C)  bf16, Conv3d(1,1,1)+BN3d folded
    b3 = b3_ref[...]                        # (C, 1)  f32

    def silu(z):                            # f32 in / f32 out (VPU + EUP)
        return z * jax.nn.sigmoid(z)

    def head(v):                            # bf16 in -> f32: 1x1x1 conv + BN + LeakyReLU
        z = jnp.dot(w3, v, preferred_element_type=f32) + b3
        return jnp.maximum(z, 0.1 * z)      # LeakyReLU(0.1) without cmp+select

    def branch(w_ref, b_ref, x):            # 1x1 Conv + BN(folded) + SiLU; bf16 MXU dot
        return silu(jnp.dot(w_ref[...], x, preferred_element_type=f32) + b_ref[...])

    # p3 branch on this S tile.
    if has_conv0:
        h0 = head(branch(w0_ref, b0_ref, x3_ref[...]).astype(bf16))       # (C, tS)
    else:
        h0 = head(x3_ref[...])              # channel == inc[0]: p3 passes through

    # p4 / p5 branches at NATIVE resolution (4x / 16x less work and HBM read).
    h1 = head(branch(w1_ref, b1_ref, x4_ref[...]).astype(bf16))           # (C, S4)
    h2 = head(branch(w2_ref, b2_ref, x5_ref[...]).astype(bf16))           # (C, S5)

    # Nearest upsample == matmul with a constant one-hot replication matrix
    # (0/1 are exact in bf16).  p5 is lifted only to p4 resolution, combined
    # there, and one (S4, tile_S) matmul lifts the result to p3 resolution.
    m4 = jnp.maximum(h1, jnp.dot(h2.astype(bf16), u5_ref[...],
                                 preferred_element_type=f32))              # (C, S4)
    m3 = jnp.dot(m4.astype(bf16), u4_ref[...], preferred_element_type=f32)  # (C, tS)

    # MaxPool3d(kernel_size=(3,1,1)) over the stacked depth axis + squeeze.
    o_ref[...] = jnp.maximum(h0, m3).astype(o_ref.dtype)


def _nearest_upsample_matrix(h, w, H, W, dtype):
    """One-hot (h*w, H*W) matrix reproducing F.interpolate(mode='nearest')."""
    hi = (jnp.arange(H) * h) // H
    wi = (jnp.arange(W) * w) // W
    src = (hi[:, None] * w + wi[None, :]).reshape(-1)          # (H*W,) source id
    return (jnp.arange(h * w)[:, None] == src[None, :]).astype(dtype)


def _pick_s_tile(S, max_tile=2048):
    """Largest multiple-of-128 proper divisor of S that is <= max_tile, else S."""
    if S % 128 != 0:
        return S
    cands = [t for t in range(128, S, 128) if S % t == 0 and t <= max_tile]
    return max(cands) if cands else S


def _vmem_limit_bytes():
    # Size the scoped VMEM limit per generation (v5e/v6e: 128 MiB physical,
    # v7x: 64 MiB); fall back to the always-safe default if the query fails.
    try:
        cap = pltpu.get_tpu_info().vmem_capacity_bytes
        return int(min(cap * 3 // 4, 100 * 1024 * 1024))
    except Exception:
        return 32 * 1024 * 1024


def scalseq_pallas(p3, p4, p5, params, *, act_dtype=jnp.bfloat16,
                   out_dtype=jnp.float32):
    """p3:(B,C0,H,W) p4:(B,C1,H4,W4) p5:(B,C2,H5,W5) NCHW -> (B,channel,H,W)."""
    B, C0, H, W = p3.shape
    _, C1, H4, W4 = p4.shape
    _, C2, H5, W5 = p5.shape
    C = params["w3"].shape[0]
    has_conv0 = "w0" in params
    if not has_conv0:
        assert C0 == C, "without conv0, inc[0] must equal channel"
    # Two-stage nearest upsample (p5 -> p4 -> p3) is exact only when the
    # spatial sizes cascade by integer factors (always true for YOLO pyramids).
    assert H % H4 == 0 and W % W4 == 0 and H4 % H5 == 0 and W4 % W5 == 0, \
        "spatial sizes must cascade by integer factors (H = k1*H4, H4 = k2*H5)"

    S, S4, S5 = H * W, H4 * W4, H5 * W5
    tile_S = _pick_s_tile(S)
    n_tiles = S // tile_S

    # NCHW -> (B, C, H*W): pure reshape (no transpose); spatial in the lanes.
    # bf16 activations halve input HBM traffic and feed the MXU natively.
    x3 = p3.reshape(B, C0, S).astype(act_dtype)
    x4 = p4.reshape(B, C1, S4).astype(act_dtype)     # native p4 resolution
    x5 = p5.reshape(B, C2, S5).astype(act_dtype)     # native p5 resolution

    # One-hot replication matrices (0/1 -> exact in bf16).
    u5 = _nearest_upsample_matrix(H5, W5, H4, W4, act_dtype)   # (S5, S4)
    u4 = _nearest_upsample_matrix(H4, W4, H, W, act_dtype)     # (S4, S)

    # Conv weights feed the MXU in bf16; biases stay f32 (added to f32 accum).
    wdt = act_dtype
    weight_args = []
    if has_conv0:
        weight_args += [params["w0"].astype(wdt), params["b0"].astype(jnp.float32)]
    weight_args += [params["w1"].astype(wdt), params["b1"].astype(jnp.float32),
                    params["w2"].astype(wdt), params["b2"].astype(jnp.float32),
                    params["w3"].astype(wdt), params["b3"].astype(jnp.float32)]

    def tiled_spec(c):
        # One (image, S-tile) lane-dense block per grid step (batch dim squeezed).
        return pl.BlockSpec((None, c, tile_S), lambda b, t: (b, 0, t))

    def image_spec(c, s):
        # Whole native-resolution map per image; index ignores the tile axis,
        # so it is only re-DMA'd when b changes.
        return pl.BlockSpec((None, c, s), lambda b, t: (b, 0, 0))

    def const_spec(arr):
        # Grid-constant operand: same block every step -> no re-DMA after step 0.
        # (pipeline_mode=pl.Buffered(1) would also single-buffer these; the
        #  saving only matters at production sizes, so the default is kept.)
        return pl.BlockSpec(arr.shape, lambda b, t: (0,) * arr.ndim)

    # Only the (S4, tile_S) column slice of u4 needed by this tile is resident.
    u4_spec = pl.BlockSpec((S4, tile_S), lambda b, t: (0, t))

    in_specs = ([tiled_spec(C0), image_spec(C1, S4), image_spec(C2, S5),
                 u4_spec, const_spec(u5)]
                + [const_spec(a) for a in weight_args])

    out = pl.pallas_call(
        functools.partial(_scalseq_kernel, has_conv0=has_conv0),
        out_shape=jax.ShapeDtypeStruct((B, C, S), out_dtype),
        grid_spec=pltpu.PrefetchScalarGridSpec(
            num_scalar_prefetch=0,
            grid=(B, n_tiles),             # both parallel -> v7x megacore sharding
            in_specs=in_specs,
            out_specs=tiled_spec(C),
        ),
        compiler_params=pltpu.CompilerParams(
            dimension_semantics=("parallel", "parallel"),
            vmem_limit_bytes=_vmem_limit_bytes(),
        ),
    )(x3, x4, x5, u4, u5, *weight_args)

    return out.reshape(B, C, H, W)        # free reshape back to NCHW


# ------------------------- deterministic parameters --------------------------
def _bn_fold(key, c, eps=1e-5):
    k1, k2, k3, k4 = jax.random.split(key, 4)
    gamma = 1.0 + 0.1 * jax.random.normal(k1, (c,), jnp.float32)
    beta = 0.1 * jax.random.normal(k2, (c,), jnp.float32)
    mean = 0.1 * jax.random.normal(k3, (c,), jnp.float32)
    var = 1.0 + 0.1 * jnp.abs(jax.random.normal(k4, (c,), jnp.float32))
    scale = gamma / jnp.sqrt(var + eps)
    shift = beta - mean * scale
    return scale, shift


def make_params(key, inc, channel):
    keys = jax.random.split(key, 9)
    params = {}

    def conv_bn(kw, kbn, cin, cout):
        # Conv2d weight (cout, cin, 1, 1) stored as (cout, cin) for W @ x.
        w = 0.1 * jax.random.normal(kw, (cout, cin), jnp.float32)
        scale, shift = _bn_fold(kbn, cout)
        return w * scale[:, None], shift[:, None]

    if inc[0] != channel:                       # mirrors `if channel != inc[0]`
        params["w0"], params["b0"] = conv_bn(keys[0], keys[1], inc[0], channel)
    params["w1"], params["b1"] = conv_bn(keys[2], keys[3], inc[1], channel)
    params["w2"], params["b2"] = conv_bn(keys[4], keys[5], inc[2], channel)

    # Conv3d(channel, channel, (1,1,1)) with bias, folded with BatchNorm3d.
    w3 = 0.1 * jax.random.normal(keys[6], (channel, channel), jnp.float32)
    b3 = 0.1 * jax.random.normal(keys[7], (channel,), jnp.float32)
    scale3, shift3 = _bn_fold(keys[8], channel)
    params["w3"] = w3 * scale3[:, None]
    params["b3"] = (b3 * scale3 + shift3)[:, None]
    return params


# --------------------------- pure-JAX reference -------------------------------
def scalseq_ref(p3, p4, p5, params):
    B, _, H, W = p3.shape

    def up(x):
        h, w = x.shape[2], x.shape[3]
        hi = (jnp.arange(H) * h) // H
        wi = (jnp.arange(W) * w) // W
        return x[:, :, hi][:, :, :, wi]

    def conv(x, w, b):
        return jnp.einsum('oi,bihw->bohw', w, x) + b[:, 0][None, :, None, None]

    silu = lambda z: z * jax.nn.sigmoid(z)
    v0 = silu(conv(p3, params["w0"], params["b0"])) if "w0" in params else p3
    v1 = silu(conv(up(p4), params["w1"], params["b1"]))
    v2 = silu(conv(up(p5), params["w2"], params["b2"]))

    def head(v):
        z = conv(v, params["w3"], params["b3"])
        return jnp.where(z >= 0, z, 0.1 * z)

    return jnp.maximum(jnp.maximum(head(v0), head(v1)), head(v2))


if __name__ == "__main__":
    inc = (8, 16, 32)      # channels of p3, p4, p5 (inc[0] != channel -> conv0)
    channel = 16
    B, H, W = 2, 16, 16    # p3 spatial; p4/p5 are 2x / 4x downsampled

    key = jax.random.PRNGKey(0)
    k3, k4, k5, kp = jax.random.split(key, 4)
    p3 = jax.random.normal(k3, (B, inc[0], H, W), jnp.float32)
    p4 = jax.random.normal(k4, (B, inc[1], H // 2, W // 2), jnp.float32)
    p5 = jax.random.normal(k5, (B, inc[2], H // 4, W // 4), jnp.float32)

    params = make_params(kp, inc, channel)

    out = jax.block_until_ready(scalseq_pallas(p3, p4, p5, params))

    # Reference sees the same bf16-rounded activations AND weights the kernel
    # reads; tolerance sized for the extra bf16 rounding of intermediates the
    # bf16-MXU path introduces (a few x bf16 eps).
    q = lambda x: x.astype(jnp.bfloat16).astype(jnp.float32)
    params_ref = {k: (q(v) if k.startswith("w") else v) for k, v in params.items()}
    ref = scalseq_ref(q(p3), q(p4), q(p5), params_ref)

    assert out.shape == (B, channel, H, W), out.shape
    err = float(jnp.max(jnp.abs(out - ref)))
    assert jnp.allclose(out, ref, atol=2e-2, rtol=2e-2), f"mismatch, max |err|={err}"

    print("KERNEL_OK")
</pallas_src>

<mosaic_0001>
module attributes {stable_mosaic.version = 11 : i64} {
  func.func @_scalseq_kernel(%arg0: i32, %arg1: i32, %arg2: memref<1x8x128xbf16, #tpu.memory_space<vmem>>, %arg3: memref<1x16x64xbf16, #tpu.memory_space<vmem>>, %arg4: memref<1x32x16xbf16, #tpu.memory_space<vmem>>, %arg5: memref<64x128xbf16, #tpu.memory_space<vmem>>, %arg6: memref<16x64xbf16, #tpu.memory_space<vmem>>, %arg7: memref<16x8xbf16, #tpu.memory_space<vmem>>, %arg8: memref<16x1xf32, #tpu.memory_space<vmem>>, %arg9: memref<16x16xbf16, #tpu.memory_space<vmem>>, %arg10: memref<16x1xf32, #tpu.memory_space<vmem>>, %arg11: memref<16x32xbf16, #tpu.memory_space<vmem>>, %arg12: memref<16x1xf32, #tpu.memory_space<vmem>>, %arg13: memref<16x16xbf16, #tpu.memory_space<vmem>>, %arg14: memref<16x1xf32, #tpu.memory_space<vmem>>, %arg15: memref<1x16x128xf32, #tpu.memory_space<vmem>>) attributes {dimension_semantics = [#tpu.dimension_semantics<parallel>, #tpu.dimension_semantics<parallel>], iteration_bounds = array<i64: 2, 2>, scalar_prefetch = 0 : i64, scratch_operands = 0 : i64, tpu.core_type = #tpu.core_type<tc>, window_params = [{transform_indices = @transform_0, window_bounds = array<i64: 1, 8, 128>}, {transform_indices = @transform_1, window_bounds = array<i64: 1, 16, 64>}, {transform_indices = @transform_2, window_bounds = array<i64: 1, 32, 16>}, {transform_indices = @transform_3, window_bounds = array<i64: 64, 128>}, {pipeline_mode = #tpu.pipeline_mode<synchronous>, transform_indices = @transform_4, window_bounds = array<i64: 16, 64>}, {pipeline_mode = #tpu.pipeline_mode<synchronous>, transform_indices = @transform_5, window_bounds = array<i64: 16, 8>}, {pipeline_mode = #tpu.pipeline_mode<synchronous>, transform_indices = @transform_6, window_bounds = array<i64: 16, 1>}, {pipeline_mode = #tpu.pipeline_mode<synchronous>, transform_indices = @transform_7, window_bounds = array<i64: 16, 16>}, {pipeline_mode = #tpu.pipeline_mode<synchronous>, transform_indices = @transform_8, window_bounds = array<i64: 16, 1>}, {pipeline_mode = #tpu.pipeline_mode<synchronous>, transform_indices = @transform_9, window_bounds = array<i64: 16, 32>}, {pipeline_mode = #tpu.pipeline_mode<synchronous>, transform_indices = @transform_10, window_bounds = array<i64: 16, 1>}, {pipeline_mode = #tpu.pipeline_mode<synchronous>, transform_indices = @transform_11, window_bounds = array<i64: 16, 16>}, {pipeline_mode = #tpu.pipeline_mode<synchronous>, transform_indices = @transform_12, window_bounds = array<i64: 16, 1>}, {transform_indices = @transform_13, window_bounds = array<i64: 1, 16, 128>}]} {
    %c0 = arith.constant 0 : index
    %c0_0 = arith.constant 0 : index
    %0 = vector.load %arg13[%c0, %c0_0] : memref<16x16xbf16, #tpu.memory_space<vmem>>, vector<16x16xbf16>
    %c0_1 = arith.constant 0 : index
    %c0_2 = arith.constant 0 : index
    %1 = vector.load %arg14[%c0_1, %c0_2] : memref<16x1xf32, #tpu.memory_space<vmem>>, vector<16x1xf32>
    %c0_3 = arith.constant 0 : index
    %c0_4 = arith.constant 0 : index
    %c0_5 = arith.constant 0 : index
    %2 = vector.load %arg2[%c0_3, %c0_4, %c0_5] : memref<1x8x128xbf16, #tpu.memory_space<vmem>>, vector<1x8x128xbf16>
    %3 = vector.shape_cast %2 : vector<1x8x128xbf16> to vector<8x128xbf16>
    %c0_6 = arith.constant 0 : index
    %c0_7 = arith.constant 0 : index
    %4 = vector.load %arg7[%c0_6, %c0_7] : memref<16x8xbf16, #tpu.memory_space<vmem>>, vector<16x8xbf16>
    %cst = arith.constant dense<0.000000e+00> : vector<16x128xf32>
    %5 = tpu.matmul %4, %3, %cst {dimension_numbers = #tpu.dot_dimension_numbers<[1], [0], [0], [1], [0, 0, 1, 1], [], []>} : vector<16x8xbf16>, vector<8x128xbf16>, vector<16x128xf32> -> vector<16x128xf32>
    %c0_8 = arith.constant 0 : index
    %c0_9 = arith.constant 0 : index
    %6 = vector.load %arg8[%c0_8, %c0_9] : memref<16x1xf32, #tpu.memory_space<vmem>>, vector<16x1xf32>
    %7 = vector.broadcast %6 : vector<16x1xf32> to vector<16x128xf32>
    %8 = arith.addf %5, %7 : vector<16x128xf32>
    %9 = arith.negf %8 : vector<16x128xf32>
    %10 = math.exp %9 : vector<16x128xf32>
    %cst_10 = arith.constant 1.000000e+00 : f32
    %11 = vector.broadcast %cst_10 : f32 to vector<16x128xf32>
    %12 = arith.addf %11, %10 : vector<16x128xf32>
    %13 = arith.divf %11, %12 : vector<16x128xf32>
    %14 = arith.mulf %8, %13 : vector<16x128xf32>
    %15 = arith.truncf %14 : vector<16x128xf32> to vector<16x128xbf16>
    %cst_11 = arith.constant dense<0.000000e+00> : vector<16x128xf32>
    %16 = tpu.matmul %0, %15, %cst_11 {dimension_numbers = #tpu.dot_dimension_numbers<[1], [0], [0], [1], [0, 0, 1, 1], [], []>} : vector<16x16xbf16>, vector<16x128xbf16>, vector<16x128xf32> -> vector<16x128xf32>
    %17 = vector.broadcast %1 : vector<16x1xf32> to vector<16x128xf32>
    %18 = arith.addf %16, %17 : vector<16x128xf32>
    %cst_12 = arith.constant 1.000000e-01 : f32
    %19 = vector.broadcast %cst_12 : f32 to vector<16x128xf32>
    %20 = arith.mulf %19, %18 : vector<16x128xf32>
    %21 = arith.maximumf %18, %20 : vector<16x128xf32>
    %c0_13 = arith.constant 0 : index
    %c0_14 = arith.constant 0 : index
    %c0_15 = arith.constant 0 : index
    %22 = vector.load %arg3[%c0_13, %c0_14, %c0_15] : memref<1x16x64xbf16, #tpu.memory_space<vmem>>, vector<1x16x64xbf16>
    %23 = vector.shape_cast %22 : vector<1x16x64xbf16> to vector<16x64xbf16>
    %c0_16 = arith.constant 0 : index
    %c0_17 = arith.constant 0 : index
    %24 = vector.load %arg9[%c0_16, %c0_17] : memref<16x16xbf16, #tpu.memory_space<vmem>>, vector<16x16xbf16>
    %cst_18 = arith.constant dense<0.000000e+00> : vector<16x64xf32>
    %25 = tpu.matmul %24, %23, %cst_18 {dimension_numbers = #tpu.dot_dimension_numbers<[1], [0], [0], [1], [0, 0, 1, 1], [], []>} : vector<16x16xbf16>, vector<16x64xbf16>, vector<16x64xf32> -> vector<16x64xf32>
    %c0_19 = arith.constant 0 : index
    %c0_20 = arith.constant 0 : index
    %26 = vector.load %arg10[%c0_19, %c0_20] : memref<16x1xf32, #tpu.memory_space<vmem>>, vector<16x1xf32>
    %27 = vector.broadcast %26 : vector<16x1xf32> to vector<16x64xf32>
    %28 = arith.addf %25, %27 : vector<16x64xf32>
    %29 = arith.negf %28 : vector<16x64xf32>
    %30 = math.exp %29 : vector<16x64xf32>
    %cst_21 = arith.constant 1.000000e+00 : f32
    %31 = vector.broadcast %cst_21 : f32 to vector<16x64xf32>
    %32 = arith.addf %31, %30 : vector<16x64xf32>
    %33 = arith.divf %31, %32 : vector<16x64xf32>
    %34 = arith.mulf %28, %33 : vector<16x64xf32>
    %35 = arith.truncf %34 : vector<16x64xf32> to vector<16x64xbf16>
    %cst_22 = arith.constant dense<0.000000e+00> : vector<16x64xf32>
    %36 = tpu.matmul %0, %35, %cst_22 {dimension_numbers = #tpu.dot_dimension_numbers<[1], [0], [0], [1], [0, 0, 1, 1], [], []>} : vector<16x16xbf16>, vector<16x64xbf16>, vector<16x64xf32> -> vector<16x64xf32>
    %37 = vector.broadcast %1 : vector<16x1xf32> to vector<16x64xf32>
    %38 = arith.addf %36, %37 : vector<16x64xf32>
    %cst_23 = arith.constant 1.000000e-01 : f32
    %39 = vector.broadcast %cst_23 : f32 to vector<16x64xf32>
    %40 = arith.mulf %39, %38 : vector<16x64xf32>
    %41 = arith.maximumf %38, %40 : vector<16x64xf32>
    %c0_24 = arith.constant 0 : index
    %c0_25 = arith.constant 0 : index
    %c0_26 = arith.constant 0 : index
    %42 = vector.load %arg4[%c0_24, %c0_25, %c0_26] : memref<1x32x16xbf16, #tpu.memory_space<vmem>>, vector<1x32x16xbf16>
    %43 = vector.shape_cast %42 : vector<1x32x16xbf16> to vector<32x16xbf16>
    %c0_27 = arith.constant 0 : index
    %c0_28 = arith.constant 0 : index
    %44 = vector.load %arg11[%c0_27, %c0_28] : memref<16x32xbf16, #tpu.memory_space<vmem>>, vector<16x32xbf16>
    %cst_29 = arith.constant dense<0.000000e+00> : vector<16x16xf32>
    %45 = tpu.matmul %44, %43, %cst_29 {dimension_numbers = #tpu.dot_dimension_numbers<[1], [0], [0], [1], [0, 0, 1, 1], [], []>} : vector<16x32xbf16>, vector<32x16xbf16>, vector<16x16xf32> -> vector<16x16xf32>
    %c0_30 = arith.constant 0 : index
    %c0_31 = arith.constant 0 : index
    %46 = vector.load %arg12[%c0_30, %c0_31] : memref<16x1xf32, #tpu.memory_space<vmem>>, vector<16x1xf32>
    %47 = vector.broadcast %46 : vector<16x1xf32> to vector<16x16xf32>
    %48 = arith.addf %45, %47 : vector<16x16xf32>
    %49 = arith.negf %48 : vector<16x16xf32>
    %50 = math.exp %49 : vector<16x16xf32>
    %cst_32 = arith.constant 1.000000e+00 : f32
    %51 = vector.broadcast %cst_32 : f32 to vector<16x16xf32>
    %52 = arith.addf %51, %50 : vector<16x16xf32>
    %53 = arith.divf %51, %52 : vector<16x16xf32>
    %54 = arith.mulf %48, %53 : vector<16x16xf32>
    %55 = arith.truncf %54 : vector<16x16xf32> to vector<16x16xbf16>
    %cst_33 = arith.constant dense<0.000000e+00> : vector<16x16xf32>
    %56 = tpu.matmul %0, %55, %cst_33 {dimension_numbers = #tpu.dot_dimension_numbers<[1], [0], [0], [1], [0, 0, 1, 1], [], []>} : vector<16x16xbf16>, vector<16x16xbf16>, vector<16x16xf32> -> vector<16x16xf32>
    %57 = vector.broadcast %1 : vector<16x1xf32> to vector<16x16xf32>
    %58 = arith.addf %56, %57 : vector<16x16xf32>
    %cst_34 = arith.constant 1.000000e-01 : f32
    %59 = vector.broadcast %cst_34 : f32 to vector<16x16xf32>
    %60 = arith.mulf %59, %58 : vector<16x16xf32>
    %61 = arith.maximumf %58, %60 : vector<16x16xf32>
    %62 = arith.truncf %61 : vector<16x16xf32> to vector<16x16xbf16>
    %c0_35 = arith.constant 0 : index
    %c0_36 = arith.constant 0 : index
    %63 = vector.load %arg6[%c0_35, %c0_36] : memref<16x64xbf16, #tpu.memory_space<vmem>>, vector<16x64xbf16>
    %cst_37 = arith.constant dense<0.000000e+00> : vector<16x64xf32>
    %64 = tpu.matmul %62, %63, %cst_37 {dimension_numbers = #tpu.dot_dimension_numbers<[1], [0], [0], [1], [0, 0, 1, 1], [], []>} : vector<16x16xbf16>, vector<16x64xbf16>, vector<16x64xf32> -> vector<16x64xf32>
    %65 = arith.maximumf %41, %64 : vector<16x64xf32>
    %66 = arith.truncf %65 : vector<16x64xf32> to vector<16x64xbf16>
    %c0_38 = arith.constant 0 : index
    %c0_39 = arith.constant 0 : index
    %67 = vector.load %arg5[%c0_38, %c0_39] : memref<64x128xbf16, #tpu.memory_space<vmem>>, vector<64x128xbf16>
    %cst_40 = arith.constant dense<0.000000e+00> : vector<16x128xf32>
    %68 = tpu.matmul %66, %67, %cst_40 {dimension_numbers = #tpu.dot_dimension_numbers<[1], [0], [0], [1], [0, 0, 1, 1], [], []>} : vector<16x64xbf16>, vector<64x128xbf16>, vector<16x128xf32> -> vector<16x128xf32>
    %69 = arith.maximumf %21, %68 : vector<16x128xf32>
    %c0_41 = arith.constant 0 : index
    %c0_42 = arith.constant 0 : index
    %c0_43 = arith.constant 0 : index
    %70 = vector.load %arg15[%c0_41, %c0_42, %c0_43] : memref<1x16x128xf32, #tpu.memory_space<vmem>>, vector<1x16x128xf32>
    %71 = vector.shape_cast %70 : vector<1x16x128xf32> to vector<16x128xf32>
    %72 = vector.shape_cast %69 : vector<16x128xf32> to vector<1x16x128xf32>
    tpu.vector_store %arg15[%c0_41, %c0_42, %c0_43], %72 {strides = array<i32>} : memref<1x16x128xf32, #tpu.memory_space<vmem>>, vector<1x16x128xf32>,
    return
  }
  func.func @transform_0(%arg0: i32, %arg1: i32) -> (i32, i32, i32) {
    %c0_i32 = arith.constant 0 : i32
    %c0_i32_0 = arith.constant 0 : i32
    return %arg0, %c0_i32, %arg1 : i32, i32, i32
  }
  func.func @transform_1(%arg0: i32, %arg1: i32) -> (i32, i32, i32) {
    %c0_i32 = arith.constant 0 : i32
    %c0_i32_0 = arith.constant 0 : i32
    %c0_i32_1 = arith.constant 0 : i32
    return %arg0, %c0_i32, %c0_i32_0 : i32, i32, i32
  }
  func.func @transform_2(%arg0: i32, %arg1: i32) -> (i32, i32, i32) {
    %c0_i32 = arith.constant 0 : i32
    %c0_i32_0 = arith.constant 0 : i32
    %c0_i32_1 = arith.constant 0 : i32
    return %arg0, %c0_i32, %c0_i32_0 : i32, i32, i32
  }
  func.func @transform_3(%arg0: i32, %arg1: i32) -> (i32, i32) {
    %c0_i32 = arith.constant 0 : i32
    %c0_i32_0 = arith.constant 0 : i32
    return %c0_i32, %arg1 : i32, i32
  }
  func.func @transform_4(%arg0: i32, %arg1: i32) -> (i32, i32) {
    %c0_i32 = arith.constant 0 : i32
    %c0_i32_0 = arith.constant 0 : i32
    %c0_i32_1 = arith.constant 0 : i32
    return %c0_i32, %c0_i32_0 : i32, i32
  }
  func.func @transform_5(%arg0: i32, %arg1: i32) -> (i32, i32) {
    %c0_i32 = arith.constant 0 : i32
    %c0_i32_0 = arith.constant 0 : i32
    %c0_i32_1 = arith.constant 0 : i32
    return %c0_i32, %c0_i32_0 : i32, i32
  }
  func.func @transform_6(%arg0: i32, %arg1: i32) -> (i32, i32) {
    %c0_i32 = arith.constant 0 : i32
    %c0_i32_0 = arith.constant 0 : i32
    %c0_i32_1 = arith.constant 0 : i32
    return %c0_i32, %c0_i32_0 : i32, i32
  }
  func.func @transform_7(%arg0: i32, %arg1: i32) -> (i32, i32) {
    %c0_i32 = arith.constant 0 : i32
    %c0_i32_0 = arith.constant 0 : i32
    %c0_i32_1 = arith.constant 0 : i32
    return %c0_i32, %c0_i32_0 : i32, i32
  }
  func.func @transform_8(%arg0: i32, %arg1: i32) -> (i32, i32) {
    %c0_i32 = arith.constant 0 : i32
    %c0_i32_0 = arith.constant 0 : i32
    %c0_i32_1 = arith.constant 0 : i32
    return %c0_i32, %c0_i32_0 : i32, i32
  }
  func.func @transform_9(%arg0: i32, %arg1: i32) -> (i32, i32) {
    %c0_i32 = arith.constant 0 : i32
    %c0_i32_0 = arith.constant 0 : i32
    %c0_i32_1 = arith.constant 0 : i32
    return %c0_i32, %c0_i32_0 : i32, i32
  }
  func.func @transform_10(%arg0: i32, %arg1: i32) -> (i32, i32) {
    %c0_i32 = arith.constant 0 : i32
    %c0_i32_0 = arith.constant 0 : i32
    %c0_i32_1 = arith.constant 0 : i32
    return %c0_i32, %c0_i32_0 : i32, i32
  }
  func.func @transform_11(%arg0: i32, %arg1: i32) -> (i32, i32) {
    %c0_i32 = arith.constant 0 : i32
    %c0_i32_0 = arith.constant 0 : i32
    %c0_i32_1 = arith.constant 0 : i32
    return %c0_i32, %c0_i32_0 : i32, i32
  }
  func.func @transform_12(%arg0: i32, %arg1: i32) -> (i32, i32) {
    %c0_i32 = arith.constant 0 : i32
    %c0_i32_0 = arith.constant 0 : i32
    %c0_i32_1 = arith.constant 0 : i32
    return %c0_i32, %c0_i32_0 : i32, i32
  }
  func.func @transform_13(%arg0: i32, %arg1: i32) -> (i32, i32, i32) {
    %c0_i32 = arith.constant 0 : i32
    %c0_i32_0 = arith.constant 0 : i32
    return %arg0, %c0_i32, %arg1 : i32, i32, i32
  }
}

</mosaic_0001>

<llo_original>
// kernel: tpu_custom_call.1
$region0: #{tpu_custom_call.1}
  #allocation0 [shape = 'u32[]', space=smem, size = 0x4, offset = 0x4, fixed_abs, tag = 'smem constant byte address 0x4 - core index']
  #allocation1 [shape = 'u32[144,128]{1,0:T(1,128)}', space=vmem, size = 0x12000, scoped, tag = 'internal scratch']
  %s0 = inlined_call_operand.vmem [shape: bf16[2,8,256], index: 0, kind: input, shape index: {}]
  %s1 = inlined_call_operand.vmem [shape: bf16[2,16,64], index: 1, kind: input, shape index: {}]
  %s2 = inlined_call_operand.vmem [shape: bf16[2,32,16], index: 2, kind: input, shape index: {}]
  %s3 = inlined_call_operand.vmem [shape: bf16[64,256], index: 3, kind: input, shape index: {}]
  %s4 = inlined_call_operand.vmem [shape: bf16[16,64], index: 4, kind: input, shape index: {}]
  %s5 = inlined_call_operand.vmem [shape: bf16[16,8], index: 5, kind: input, shape index: {}]
  %s6 = inlined_call_operand.vmem [shape: f32[16,1], index: 6, kind: input, shape index: {}]
  %s7 = inlined_call_operand.vmem [shape: bf16[16,16], index: 7, kind: input, shape index: {}]
  %s8 = inlined_call_operand.vmem [shape: f32[16,1], index: 8, kind: input, shape index: {}]
  %s9 = inlined_call_operand.vmem [shape: bf16[16,32], index: 9, kind: input, shape index: {}]
  %s10 = inlined_call_operand.vmem [shape: f32[16,1], index: 10, kind: input, shape index: {}]
  %s11 = inlined_call_operand.vmem [shape: bf16[16,16], index: 11, kind: input, shape index: {}]
  %s12 = inlined_call_operand.vmem [shape: f32[16,1], index: 12, kind: input, shape index: {}]
  %s13 = inlined_call_operand.hbm [shape: f32[2,16,256], index: 13, kind: output, shape index: {}]
  %s14 = sld [smem:[#allocation0]]
  $region126: #{tpu_custom_call.1} parent=0
    _
  %s16 = ssub.s32 1, %s14
  %s17 = scalar_select 0, %s16, %s14
  $region1: #{tpu_custom_call.1} parent=0
    #allocation2 [shape = 'u8[32768]{0}', space=vmem, size = 0x8000, scoped, tag = 'input window, operand 3']
    #allocation3 [shape = 'u8[16384]{0}', space=vmem, size = 0x4000, scoped, tag = 'output window, operand 0']
    #allocation4 [shape = 's32[2]{0}', space=sflag, size = 0x8, scoped, tag = 'scoped memory for tpu_custom_call.1']
    %18 = vsyncpa [#allocation4], 0
    %s19 = scalar_lea.sflag [#allocation4], 1
    %20 = vsyncpa %s19, 0
    loop: start=0, step=1, limit=6
    $region2: #{tpu_custom_call.1} parent=1 // loop_pre_header
      _
    $region3: #{tpu_custom_call.1} parent=1 // loop_header
      %s22 = sphi 0, %s26
      %p23 = scmp.ge.s32.totalorder %s22, 6
      %s29 = sphi 0, %s41
      %s30 = sphi 0, %s37
      %s31 = sphi 0, %s29
      %s32 = sphi 0, %s30
      %s33 = sphi 0, %s31
      %s34 = sphi 0, %s32
      %s46 = sphi 0, %s48
      %s49 = sphi 0, %s46
      %s50 = sphi 0, %s49
      %s66 = sphi 0, %s50
      %s72 = sphi 0, %s74
      %s75 = sphi 0, %s72
      %s76 = sphi 0, %s75
      %s92 = sphi 0, %s76
      %s98 = sphi 0, %s100
      %s101 = sphi 0, %s98
      %s102 = sphi 0, %s101
      %s118 = sphi 0, %s102
      %s124 = sphi 0, %s126
      %s127 = sphi 0, %s124
      %s128 = sphi 0, %s127
      %s144 = sphi 0, %s128
      %s148 = sphi 0, %s148
      %s150 = sphi 0, %s148
      %s151 = sphi 0, %s150
      %s165 = sphi 0, %s151
      %s169 = sphi 0, %s169
      %s171 = sphi 0, %s169
      %s172 = sphi 0, %s171
      %s186 = sphi 0, %s172
      %s190 = sphi 0, %s190
      %s192 = sphi 0, %s190
      %s193 = sphi 0, %s192
      %s207 = sphi 0, %s193
      %s211 = sphi 0, %s211
      %s213 = sphi 0, %s211
      %s214 = sphi 0, %s213
      %s228 = sphi 0, %s214
      %s232 = sphi 0, %s232
      %s234 = sphi 0, %s232
      %s235 = sphi 0, %s234
      %s249 = sphi 0, %s235
      %s253 = sphi 0, %s253
      %s255 = sphi 0, %s253
      %s256 = sphi 0, %s255
      %s270 = sphi 0, %s256
      %s274 = sphi 0, %s274
      %s276 = sphi 0, %s274
      %s277 = sphi 0, %s276
      %s291 = sphi 0, %s277
      %s295 = sphi 0, %s295
      %s297 = sphi 0, %s295
      %s298 = sphi 0, %s297
      %s312 = sphi 0, %s298
      %s316 = sphi 0, %s316
      %s318 = sphi 0, %s316
      %s319 = sphi 0, %s318
      %s333 = sphi 0, %s319
      %s341 = sphi 0, %s343
      %s344 = sphi 0, %s341
      %s345 = sphi 0, %s344
      %s361 = sphi 0, %s345
    $region4: #{tpu_custom_call.1} parent=1 // loop_header_branch
      %25 = sbr.rel (%p23) target = $region8
    $region5: #{tpu_custom_call.1} parent=1 // loop_body
      %s27 = ssub.s32 %s22, 1
      %s28 = ssub.s32 %s22, 2
      %s35 = sadd.s32 1, %s30
      %p36 = scmp.ge.s32.totalorder %s35, 2
      %s37 = scalar_select %p36, 0, %s35
      %s38 = sadd.s32 1, %s29
      %s39 = scalar_select %p36, %s38, %s29
      %p40 = scmp.ge.s32.totalorder %s39, 2
      %s41 = scalar_select %p40, 0, %s39
      %s42 = ssub.s32 %s29, %s41
      %s43 = ssub.s32 %s30, %s37
      %s44 = sor.u32 %s42, %s43
      %p45 = scmp.eq.s32.totalorder %s44, 0
      %s47 = sadd.s32 %s46, 1
      %s48 = scalar_select %p45, %s46, %s47
      %p51 = pneg %p45
      %p52 = scmp.eq.s32.totalorder %s22, 3
      %p53 = por %p51, %p52
      %p54 = scmp.ne.s32.totalorder %s46, %s49
      %p55 = scmp.eq.s32.totalorder %s22, 0
      %p56 = por %p54, %p55
      %p57 = scmp.ne.s32.totalorder %s46, %s49
      %p58 = scmp.eq.s32.totalorder %s27, 3
      %p59 = por %p57, %p58
      %p60 = scmp.ne.s32.totalorder %s49, %s50
      %p61 = scmp.eq.s32.totalorder %s27, 0
      %p62 = por %p60, %p61
      %p63 = scmp.ne.s32.totalorder %s49, %s50
      %p64 = scmp.eq.s32.totalorder %s28, 3
      %p65 = por %p63, %p64
      %p67 = scmp.ne.s32.totalorder %s50, %s66
      %p68 = scmp.eq.s32.totalorder %s28, 0
      %p69 = por %p67, %p68
      %s70 = ssub.s32 %s29, %s41
      %p71 = scmp.eq.s32.totalorder %s70, 0
      %s73 = sadd.s32 %s72, 1
      %s74 = scalar_select %p71, %s72, %s73
      %p77 = pneg %p71
      %p78 = scmp.eq.s32.totalorder %s22, 3
      %p79 = por %p77, %p78
      %p80 = scmp.ne.s32.totalorder %s72, %s75
      %p81 = scmp.eq.s32.totalorder %s22, 0
      %p82 = por %p80, %p81
      %p83 = scmp.ne.s32.totalorder %s72, %s75
      %p84 = scmp.eq.s32.totalorder %s27, 3
      %p85 = por %p83, %p84
      %p86 = scmp.ne.s32.totalorder %s75, %s76
      %p87 = scmp.eq.s32.totalorder %s27, 0
      %p88 = por %p86, %p87
      %p89 = scmp.ne.s32.totalorder %s75, %s76
      %p90 = scmp.eq.s32.totalorder %s28, 3
      %p91 = por %p89, %p90
      %p93 = scmp.ne.s32.totalorder %s76, %s92
      %p94 = scmp.eq.s32.totalorder %s28, 0
      %p95 = por %p93, %p94
      %s96 = ssub.s32 %s29, %s41
      %p97 = scmp.eq.s32.totalorder %s96, 0
      %s99 = sadd.s32 %s98, 1
      %s100 = scalar_select %p97, %s98, %s99
      %p103 = pneg %p97
      %p104 = scmp.eq.s32.totalorder %s22, 3
      %p105 = por %p103, %p104
      %p106 = scmp.ne.s32.totalorder %s98, %s101
      %p107 = scmp.eq.s32.totalorder %s22, 0
      %p108 = por %p106, %p107
      %p109 = scmp.ne.s32.totalorder %s98, %s101
      %p110 = scmp.eq.s32.totalorder %s27, 3
      %p111 = por %p109, %p110
      %p112 = scmp.ne.s32.totalorder %s101, %s102
      %p113 = scmp.eq.s32.totalorder %s27, 0
      %p114 = por %p112, %p113
      %p115 = scmp.ne.s32.totalorder %s101, %s102
      %p116 = scmp.eq.s32.totalorder %s28, 3
      %p117 = por %p115, %p116
      %p119 = scmp.ne.s32.totalorder %s102, %s118
      %p120 = scmp.eq.s32.totalorder %s28, 0
      %p121 = por %p119, %p120
      %s122 = ssub.s32 %s30, %s37
      %p123 = scmp.eq.s32.totalorder %s122, 0
      %s125 = sadd.s32 %s124, 1
      %s126 = scalar_select %p123, %s124, %s125
      %p129 = pneg %p123
      %p130 = scmp.eq.s32.totalorder %s22, 3
      %p131 = por %p129, %p130
      %p132 = scmp.ne.s32.totalorder %s124, %s127
      %p133 = scmp.eq.s32.totalorder %s22, 0
      %p134 = por %p132, %p133
      %p135 = scmp.ne.s32.totalorder %s124, %s127
      %p136 = scmp.eq.s32.totalorder %s27, 3
      %p137 = por %p135, %p136
      %p138 = scmp.ne.s32.totalorder %s127, %s128
      %p139 = scmp.eq.s32.totalorder %s27, 0
      %p140 = por %p138, %p139
      %p141 = scmp.ne.s32.totalorder %s127, %s128
      %p142 = scmp.eq.s32.totalorder %s28, 3
      %p143 = por %p141, %p142
      %p145 = scmp.ne.s32.totalorder %s128, %s144
      %p146 = scmp.eq.s32.totalorder %s28, 0
      %p147 = por %p145, %p146
      %s149 = sadd.s32 %s148, 1
      %p152 = scmp.eq.s32.totalorder %s22, 3
      %p153 = scmp.ne.s32.totalorder %s148, %s150
      %p154 = scmp.eq.s32.totalorder %s22, 0
      %p155 = por %p153, %p154
      %p156 = scmp.ne.s32.totalorder %s148, %s150
      %p157 = scmp.eq.s32.totalorder %s27, 3
      %p158 = por %p156, %p157
      %p159 = scmp.ne.s32.totalorder %s150, %s151
      %p160 = scmp.eq.s32.totalorder %s27, 0
      %p161 = por %p159, %p160
      %p162 = scmp.ne.s32.totalorder %s150, %s151
      %p163 = scmp.eq.s32.totalorder %s28, 3
      %p164 = por %p162, %p163
      %p166 = scmp.ne.s32.totalorder %s151, %s165
      %p167 = scmp.eq.s32.totalorder %s28, 0
      %p168 = por %p166, %p167
      %s170 = sadd.s32 %s169, 1
      %p173 = scmp.eq.s32.totalorder %s22, 3
      %p174 = scmp.ne.s32.totalorder %s169, %s171
      %p175 = scmp.eq.s32.totalorder %s22, 0
      %p176 = por %p174, %p175
      %p177 = scmp.ne.s32.totalorder %s169, %s171
      %p178 = scmp.eq.s32.totalorder %s27, 3
      %p179 = por %p177, %p178
      %p180 = scmp.ne.s32.totalorder %s171, %s172
      %p181 = scmp.eq.s32.totalorder %s27, 0
      %p182 = por %p180, %p181
      %p183 = scmp.ne.s32.totalorder %s171, %s172
      %p184 = scmp.eq.s32.totalorder %s28, 3
      %p185 = por %p183, %p184
      %p187 = scmp.ne.s32.totalorder %s172, %s186
      %p188 = scmp.eq.s32.totalorder %s28, 0
      %p189 = por %p187, %p188
      %s191 = sadd.s32 %s190, 1
      %p194 = scmp.eq.s32.totalorder %s22, 3
      %p195 = scmp.ne.s32.totalorder %s190, %s192
      %p196 = scmp.eq.s32.totalorder %s22, 0
      %p197 = por %p195, %p196
      %p198 = scmp.ne.s32.totalorder %s190, %s192
      %p199 = scmp.eq.s32.totalorder %s27, 3
      %p200 = por %p198, %p199
      %p201 = scmp.ne.s32.totalorder %s192, %s193
      %p202 = scmp.eq.s32.totalorder %s27, 0
      %p203 = por %p201, %p202
      %p204 = scmp.ne.s32.totalorder %s192, %s193
      %p205 = scmp.eq.s32.totalorder %s28, 3
      %p206 = por %p204, %p205
      %p208 = scmp.ne.s32.totalorder %s193, %s207
      %p209 = scmp.eq.s32.totalorder %s28, 0
      %p210 = por %p208, %p209
      %s212 = sadd.s32 %s211, 1
      %p215 = scmp.eq.s32.totalorder %s22, 3
      %p216 = scmp.ne.s32.totalorder %s211, %s213
      %p217 = scmp.eq.s32.totalorder %s22, 0
      %p218 = por %p216, %p217
      %p219 = scmp.ne.s32.totalorder %s211, %s213
      %p220 = scmp.eq.s32.totalorder %s27, 3
      %p221 = por %p219, %p220
      %p222 = scmp.ne.s32.totalorder %s213, %s214
      %p223 = scmp.eq.s32.totalorder %s27, 0
      %p224 = por %p222, %p223
      %p225 = scmp.ne.s32.totalorder %s213, %s214
      %p226 = scmp.eq.s32.totalorder %s28, 3
      %p227 = por %p225, %p226
      %p229 = scmp.ne.s32.totalorder %s214, %s228
      %p230 = scmp.eq.s32.totalorder %s28, 0
      %p231 = por %p229, %p230
      %s233 = sadd.s32 %s232, 1
      %p236 = scmp.eq.s32.totalorder %s22, 3
      %p237 = scmp.ne.s32.totalorder %s232, %s234
      %p238 = scmp.eq.s32.totalorder %s22, 0
      %p239 = por %p237, %p238
      %p240 = scmp.ne.s32.totalorder %s232, %s234
      %p241 = scmp.eq.s32.totalorder %s27, 3
      %p242 = por %p240, %p241
      %p243 = scmp.ne.s32.totalorder %s234, %s235
      %p244 = scmp.eq.s32.totalorder %s27, 0
      %p245 = por %p243, %p244
      %p246 = scmp.ne.s32.totalorder %s234, %s235
      %p247 = scmp.eq.s32.totalorder %s28, 3
      %p248 = por %p246, %p247
      %p250 = scmp.ne.s32.totalorder %s235, %s249
      %p251 = scmp.eq.s32.totalorder %s28, 0
      %p252 = por %p250, %p251
      %s254 = sadd.s32 %s253, 1
      %p257 = scmp.eq.s32.totalorder %s22, 3
      %p258 = scmp.ne.s32.totalorder %s253, %s255
      %p259 = scmp.eq.s32.totalorder %s22, 0
      %p260 = por %p258, %p259
      %p261 = scmp.ne.s32.totalorder %s253, %s255
      %p262 = scmp.eq.s32.totalorder %s27, 3
      %p263 = por %p261, %p262
      %p264 = scmp.ne.s32.totalorder %s255, %s256
      %p265 = scmp.eq.s32.totalorder %s27, 0
      %p266 = por %p264, %p265
      %p267 = scmp.ne.s32.totalorder %s255, %s256
      %p268 = scmp.eq.s32.totalorder %s28, 3
      %p269 = por %p267, %p268
      %p271 = scmp.ne.s32.totalorder %s256, %s270
      %p272 = scmp.eq.s32.totalorder %s28, 0
      %p273 = por %p271, %p272
      %s275 = sadd.s32 %s274, 1
      %p278 = scmp.eq.s32.totalorder %s22, 3
      %p279 = scmp.ne.s32.totalorder %s274, %s276
      %p280 = scmp.eq.s32.totalorder %s22, 0
      %p281 = por %p279, %p280
      %p282 = scmp.ne.s32.totalorder %s274, %s276
      %p283 = scmp.eq.s32.totalorder %s27, 3
      %p284 = por %p282, %p283
      %p285 = scmp.ne.s32.totalorder %s276, %s277
      %p286 = scmp.eq.s32.totalorder %s27, 0
      %p287 = por %p285, %p286
      %p288 = scmp.ne.s32.totalorder %s276, %s277
      %p289 = scmp.eq.s32.totalorder %s28, 3
      %p290 = por %p288, %p289
      %p292 = scmp.ne.s32.totalorder %s277, %s291
      %p293 = scmp.eq.s32.totalorder %s28, 0
      %p294 = por %p292, %p293
      %s296 = sadd.s32 %s295, 1
      %p299 = scmp.eq.s32.totalorder %s22, 3
      %p300 = scmp.ne.s32.totalorder %s295, %s297
      %p301 = scmp.eq.s32.totalorder %s22, 0
      %p302 = por %p300, %p301
      %p303 = scmp.ne.s32.totalorder %s295, %s297
      %p304 = scmp.eq.s32.totalorder %s27, 3
      %p305 = por %p303, %p304
      %p306 = scmp.ne.s32.totalorder %s297, %s298
      %p307 = scmp.eq.s32.totalorder %s27, 0
      %p308 = por %p306, %p307
      %p309 = scmp.ne.s32.totalorder %s297, %s298
      %p310 = scmp.eq.s32.totalorder %s28, 3
      %p311 = por %p309, %p310
      %p313 = scmp.ne.s32.totalorder %s298, %s312
      %p314 = scmp.eq.s32.totalorder %s28, 0
      %p315 = por %p313, %p314
      %s317 = sadd.s32 %s316, 1
      %p320 = scmp.eq.s32.totalorder %s22, 3
      %p321 = scmp.ne.s32.totalorder %s316, %s318
      %p322 = scmp.eq.s32.totalorder %s22, 0
      %p323 = por %p321, %p322
      %p324 = scmp.ne.s32.totalorder %s316, %s318
      %p325 = scmp.eq.s32.totalorder %s27, 3
      %p326 = por %p324, %p325
      %p327 = scmp.ne.s32.totalorder %s318, %s319
      %p328 = scmp.eq.s32.totalorder %s27, 0
      %p329 = por %p327, %p328
      %p330 = scmp.ne.s32.totalorder %s318, %s319
      %p331 = scmp.eq.s32.totalorder %s28, 3
      %p332 = por %p330, %p331
      %p334 = scmp.ne.s32.totalorder %s319, %s333
      %p335 = scmp.eq.s32.totalorder %s28, 0
      %p336 = por %p334, %p335
      %s337 = ssub.s32 %s29, %s41
      %s338 = ssub.s32 %s30, %s37
      %s339 = sor.u32 %s337, %s338
      %p340 = scmp.eq.s32.totalorder %s339, 0
      %s342 = sadd.s32 %s341, 1
      %s343 = scalar_select %p340, %s341, %s342
      %p346 = pneg %p340
      %p347 = scmp.eq.s32.totalorder %s22, 3
      %p348 = por %p346, %p347
      %p349 = scmp.ne.s32.totalorder %s341, %s344
      %p350 = scmp.eq.s32.totalorder %s22, 0
      %p351 = por %p349, %p350
      %p352 = scmp.ne.s32.totalorder %s341, %s344
      %p353 = scmp.eq.s32.totalorder %s27, 3
      %p354 = por %p352, %p353
      %p355 = scmp.ne.s32.totalorder %s344, %s345
      %p356 = scmp.eq.s32.totalorder %s27, 0
      %p357 = por %p355, %p356
      %p358 = scmp.ne.s32.totalorder %s344, %s345
      %p359 = scmp.eq.s32.totalorder %s28, 3
      %p360 = por %p358, %p359
      %p362 = scmp.ne.s32.totalorder %s345, %s361
      %p363 = scmp.eq.s32.totalorder %s28, 0
      %p364 = por %p362, %p363
      %p365 = scmp.le.s32.totalorder 1, %s22
      %p366 = scmp.lt.s32.totalorder %s22, 5
      %p367 = pnand %p365, %p366
      %p368 = pneg %p367
      // Predicated region
      $region9: #{tpu_custom_call.1} parent=5 // pred_check
        _
      $region10: #{tpu_custom_call.1} parent=5 // pred_check_branch
        %370 = sbr.rel (%p367) target = $region12
      $region11: #{tpu_custom_call.1} parent=5 // pred_region
        %s371 = ssub.s32 %s22, 1
        // Predicated region
        $region13: #{tpu_custom_call.1} parent=11 // pred_check
          %p372 = pneg %p161
        $region14: #{tpu_custom_call.1} parent=11 // pred_check_branch
          %374 = sbr.rel (%p372) target = $region16
        $region15: #{tpu_custom_call.1} parent=11 // pred_region
          _
        $region16: #{tpu_custom_call.1} parent=11 // pred_fallthru
          _
        // Predicated region
        $region17: #{tpu_custom_call.1} parent=11 // pred_check
          %p375 = pneg %p182
        $region18: #{tpu_custom_call.1} parent=11 // pred_check_branch
          %377 = sbr.rel (%p375) target = $region20
        $region19: #{tpu_custom_call.1} parent=11 // pred_region
          _
        $region20: #{tpu_custom_call.1} parent=11 // pred_fallthru
          _
        // Predicated region
        $region21: #{tpu_custom_call.1} parent=11 // pred_check
          %p378 = pneg %p203
        $region22: #{tpu_custom_call.1} parent=11 // pred_check_branch
          %380 = sbr.rel (%p378) target = $region24
        $region23: #{tpu_custom_call.1} parent=11 // pred_region
          _
        $region24: #{tpu_custom_call.1} parent=11 // pred_fallthru
          _
        // Predicated region
        $region25: #{tpu_custom_call.1} parent=11 // pred_check
          %p381 = pneg %p224
        $region26: #{tpu_custom_call.1} parent=11 // pred_check_branch
          %383 = sbr.rel (%p381) target = $region28
        $region27: #{tpu_custom_call.1} parent=11 // pred_region
          _
        $region28: #{tpu_custom_call.1} parent=11 // pred_fallthru
          _
        // Predicated region
        $region29: #{tpu_custom_call.1} parent=11 // pred_check
          %p384 = pneg %p245
        $region30: #{tpu_custom_call.1} parent=11 // pred_check_branch
          %386 = sbr.rel (%p384) target = $region32
        $region31: #{tpu_custom_call.1} parent=11 // pred_region
          _
        $region32: #{tpu_custom_call.1} parent=11 // pred_fallthru
          _
        // Predicated region
        $region33: #{tpu_custom_call.1} parent=11 // pred_check
          %p387 = pneg %p266
        $region34: #{tpu_custom_call.1} parent=11 // pred_check_branch
          %389 = sbr.rel (%p387) target = $region36
        $region35: #{tpu_custom_call.1} parent=11 // pred_region
          _
        $region36: #{tpu_custom_call.1} parent=11 // pred_fallthru
          _
        // Predicated region
        $region37: #{tpu_custom_call.1} parent=11 // pred_check
          %p390 = pneg %p287
        $region38: #{tpu_custom_call.1} parent=11 // pred_check_branch
          %392 = sbr.rel (%p390) target = $region40
        $region39: #{tpu_custom_call.1} parent=11 // pred_region
          _
        $region40: #{tpu_custom_call.1} parent=11 // pred_fallthru
          _
        // Predicated region
        $region41: #{tpu_custom_call.1} parent=11 // pred_check
          %p393 = pneg %p308
        $region42: #{tpu_custom_call.1} parent=11 // pred_check_branch
          %395 = sbr.rel (%p393) target = $region44
        $region43: #{tpu_custom_call.1} parent=11 // pred_region
          _
        $region44: #{tpu_custom_call.1} parent=11 // pred_fallthru
          _
        // Predicated region
        $region45: #{tpu_custom_call.1} parent=11 // pred_check
          %p396 = pneg %p329
        $region46: #{tpu_custom_call.1} parent=11 // pred_check_branch
          %398 = sbr.rel (%p396) target = $region48
        $region47: #{tpu_custom_call.1} parent=11 // pred_region
          _
        $region48: #{tpu_custom_call.1} parent=11 // pred_fallthru
          _
      $region12: #{tpu_custom_call.1} parent=5 // pred_fallthru
        _
      %p399 = scmp.lt.s32.totalorder %s22, 4
      // Predicated region
      $region49: #{tpu_custom_call.1} parent=5 // pred_check
        %p400 = pneg %p399
      $region50: #{tpu_custom_call.1} parent=5 // pred_check_branch
        %402 = sbr.rel (%p400) target = $region52
      $region51: #{tpu_custom_call.1} parent=5 // pred_region
        // Predicated region
        $region53: #{tpu_custom_call.1} parent=51 // pred_check
          %p403 = pneg %p56
        $region54: #{tpu_custom_call.1} parent=51 // pred_check_branch
          %405 = sbr.rel (%p403) target = $region56
        $region55: #{tpu_custom_call.1} parent=51 // pred_region
          %p406 = scmp.lt.s32.totalorder %s29, 1
          %s407 = scalar_select %p406, %s29, 1
          %p408 = scmp.lt.s32.totalorder %s30, 1
          %s409 = scalar_select %p408, %s30, 1
          %s410 = smul.addr %s407, 2
          %s411 = sadd.s32 %s409, %s410
          %s412 = smul.addr %s411, 4
          %s413 = scalar_lea.vmem %s0, %s412
        $region56: #{tpu_custom_call.1} parent=51 // pred_fallthru
          _
        // Predicated region
        $region57: #{tpu_custom_call.1} parent=51 // pred_check
          %p414 = pneg %p82
        $region58: #{tpu_custom_call.1} parent=51 // pred_check_branch
          %416 = sbr.rel (%p414) target = $region60
        $region59: #{tpu_custom_call.1} parent=51 // pred_region
          %p417 = scmp.lt.s32.totalorder %s29, 1
          %s418 = scalar_select %p417, %s29, 1
          %s419 = smul.addr %s418, 2
          %s420 = smul.addr %s419, 4
          %s421 = scalar_lea.vmem %s1, %s420
        $region60: #{tpu_custom_call.1} parent=51 // pred_fallthru
          _
        // Predicated region
        $region61: #{tpu_custom_call.1} parent=51 // pred_check
          %p422 = pneg %p108
        $region62: #{tpu_custom_call.1} parent=51 // pred_check_branch
          %424 = sbr.rel (%p422) target = $region64
        $region63: #{tpu_custom_call.1} parent=51 // pred_region
          %p425 = scmp.lt.s32.totalorder %s29, 1
          %s426 = scalar_select %p425, %s29, 1
          %s427 = smul.addr %s426, 4
          %s428 = smul.addr %s427, 4
          %s429 = scalar_lea.vmem %s2, %s428
        $region64: #{tpu_custom_call.1} parent=51 // pred_fallthru
          _
        // Predicated region
        $region65: #{tpu_custom_call.1} parent=51 // pred_check
          %p430 = pneg %p134
        $region66: #{tpu_custom_call.1} parent=51 // pred_check_branch
          %432 = sbr.rel (%p430) target = $region68
        $region67: #{tpu_custom_call.1} parent=51 // pred_region
          %s433 = sand.u32 %s124, 1
          %s434 = sand.u32 %s124, 1
          %s435 = smul.addr %s434, 32
          %s436 = scalar_lea.vmem [#allocation2], %s435
          %s437 = smul.addr %s30, 4
          %s438 = scalar_lea.vmem %s3, %s437
          // Predicated region
          $region69: #{tpu_custom_call.1} parent=67 // pred_check
            _
          $region70: #{tpu_custom_call.1} parent=67 // pred_check_branch
            %440 = sbr.rel (0) target = $region72
          $region71: #{tpu_custom_call.1} parent=67 // pred_region
            // Predicated region
            $region73: #{tpu_custom_call.1} parent=71 // pred_check
              _
            $region74: #{tpu_custom_call.1} parent=71 // pred_check_branch
              %442 = sbr.rel target = $region76
            $region75: #{tpu_custom_call.1} parent=71 // pred_region
              // Predicated region
              $region88: #{tpu_custom_call.1} parent=75 // pred_check
                _
              $region89: #{tpu_custom_call.1} parent=75 // pred_check_branch
                %471 = sbr.rel (0) target = $region91
              $region90: #{tpu_custom_call.1} parent=75 // pred_region
                loop: start=0, step=1, limit=1
                $region92: #{tpu_custom_call.1} parent=90 // loop_pre_header
                  _
                $region93: #{tpu_custom_call.1} parent=90 // loop_header
                  %s473 = sphi 0, %s477
                  %p474 = scmp.ge.s32.totalorder %s473, 1
                  %s478 = sphi %s438, %s438
                  %s479 = sphi %s436, %s436
                $region94: #{tpu_custom_call.1} parent=90 // loop_header_branch
                  %476 = sbr.rel (%p474) target = $region98
                $region95: #{tpu_custom_call.1} parent=90 // loop_body
                  _
                $region96: #{tpu_custom_call.1} parent=90 // loop_footer
                  %s477 = sadd.s32 1, %s473
                $region97: #{tpu_custom_call.1} parent=90 // loop_footer_branch
                  %472 = sbr.rel target = $region93
                $region98: #{tpu_custom_call.1} parent=90 // loop_exit
                  _
                loop: start=0, step=1, limit=1
                $region99: #{tpu_custom_call.1} parent=90 // loop_pre_header
                  _
                $region100: #{tpu_custom_call.1} parent=90 // loop_header
                  %s482 = sphi 0, %s486
                  %p483 = scmp.ge.s32.totalorder %s482, 1
                  %s487 = sphi %s438, %s438
                  %s488 = sphi %s436, %s436
                $region101: #{tpu_custom_call.1} parent=90 // loop_header_branch
                  %485 = sbr.rel (%p483) target = $region105
                $region102: #{tpu_custom_call.1} parent=90 // loop_body
                  %v489 = vld [vmem:[%s487] sm:$0xf]
                  %490 = vst [vmem:[%s488] sm:$0xf] %v489
                  %v491 = vld [vmem:[%s487 + $0x8] sm:$0xf]
                  %492 = vst [vmem:[%s488 + $0x4] sm:$0xf] %v491
                  %v493 = vld [vmem:[%s487 + $0x10] sm:$0xf]
                  %494 = vst [vmem:[%s488 + $0x8] sm:$0xf] %v493
                  %v495 = vld [vmem:[%s487 + $0x18] sm:$0xf]
                  %496 = vst [vmem:[%s488 + $0xc] sm:$0xf] %v495
                  %v497 = vld [vmem:[%s487 + $0x20] sm:$0xf]
                  %498 = vst [vmem:[%s488 + $0x10] sm:$0xf] %v497
                  %v499 = vld [vmem:[%s487 + $0x28] sm:$0xf]
                  %500 = vst [vmem:[%s488 + $0x14] sm:$0xf] %v499
                  %v501 = vld [vmem:[%s487 + $0x30] sm:$0xf]
                  %502 = vst [vmem:[%s488 + $0x18] sm:$0xf] %v501
                  %v503 = vld [vmem:[%s487 + $0x38] sm:$0xf]
                  %504 = vst [vmem:[%s488 + $0x1c] sm:$0xf] %v503
                $region103: #{tpu_custom_call.1} parent=90 // loop_footer
                  %s486 = sadd.s32 1, %s482
                $region104: #{tpu_custom_call.1} parent=90 // loop_footer_branch
                  %481 = sbr.rel target = $region100
                $region105: #{tpu_custom_call.1} parent=90 // loop_exit
                  _
              $region91: #{tpu_custom_call.1} parent=75 // pred_fallthru
                _
            $region76: #{tpu_custom_call.1} parent=71 // pred_fallthru
              _
            // Predicated region
            $region77: #{tpu_custom_call.1} parent=71 // pred_check
              _
            $region78: #{tpu_custom_call.1} parent=71 // pred_check_branch
              %444 = sbr.rel (0) target = $region80
            $region79: #{tpu_custom_call.1} parent=71 // pred_region
              loop: start=0, step=1, limit=1
              $region81: #{tpu_custom_call.1} parent=79 // loop_pre_header
                _
              $region82: #{tpu_custom_call.1} parent=79 // loop_header
                %s447 = sphi 0, %s451
                %p448 = scmp.ge.s32.totalorder %s447, 1
                %s452 = sphi %s438, %s438
                %s453 = sphi %s436, %s436
              $region83: #{tpu_custom_call.1} parent=79 // loop_header_branch
                %450 = sbr.rel (%p448) target = $region87
              $region84: #{tpu_custom_call.1} parent=79 // loop_body
                %v454 = vld [vmem:[%s452] sm:$0xf]
                %455 = vst [vmem:[%s453] sm:$0xf] %v454
                %v456 = vld [vmem:[%s452 + $0x8] sm:$0xf]
                %457 = vst [vmem:[%s453 + $0x4] sm:$0xf] %v456
                %v458 = vld [vmem:[%s452 + $0x10] sm:$0xf]
                %459 = vst [vmem:[%s453 + $0x8] sm:$0xf] %v458
                %v460 = vld [vmem:[%s452 + $0x18] sm:$0xf]
                %461 = vst [vmem:[%s453 + $0xc] sm:$0xf] %v460
                %v462 = vld [vmem:[%s452 + $0x20] sm:$0xf]
                %463 = vst [vmem:[%s453 + $0x10] sm:$0xf] %v462
                %v464 = vld [vmem:[%s452 + $0x28] sm:$0xf]
                %465 = vst [vmem:[%s453 + $0x14] sm:$0xf] %v464
                %v466 = vld [vmem:[%s452 + $0x30] sm:$0xf]
                %467 = vst [vmem:[%s453 + $0x18] sm:$0xf] %v466
                %v468 = vld [vmem:[%s452 + $0x38] sm:$0xf]
                %469 = vst [vmem:[%s453 + $0x1c] sm:$0xf] %v468
              $region85: #{tpu_custom_call.1} parent=79 // loop_footer
                %s451 = sadd.s32 1, %s447
              $region86: #{tpu_custom_call.1} parent=79 // loop_footer_branch
                %446 = sbr.rel target = $region82
              $region87: #{tpu_custom_call.1} parent=79 // loop_exit
                _
            $region80: #{tpu_custom_call.1} parent=71 // pred_fallthru
              _
          $region72: #{tpu_custom_call.1} parent=67 // pred_fallthru
            _
          %505 = vnop
        $region68: #{tpu_custom_call.1} parent=51 // pred_fallthru
          _
      $region52: #{tpu_custom_call.1} parent=5 // pred_fallthru
        _
      %p506 = scmp.le.s32.totalorder 1, %s22
      %p507 = scmp.lt.s32.totalorder %s22, 5
      %p508 = pnand %p506, %p507
      %p509 = pneg %p508
      // Predicated region
      $region106: #{tpu_custom_call.1} parent=5 // pred_check
        _
      $region107: #{tpu_custom_call.1} parent=5 // pred_check_branch
        %511 = sbr.rel (%p508) target = $region109
      $region108: #{tpu_custom_call.1} parent=5 // pred_region
        %s512 = ssub.s32 %s22, 1
        %s513 = sand.u32 %s127, 1
        %s514 = sand.u32 %s127, 1
        %s515 = smul.addr %s514, 32
        %s516 = scalar_lea.vmem [#allocation2], %s515
        // Predicated region
        $region110: #{tpu_custom_call.1} parent=108 // pred_check
          %p517 = pneg %p140
        $region111: #{tpu_custom_call.1} parent=108 // pred_check_branch
          %519 = sbr.rel (%p517) target = $region113
        $region112: #{tpu_custom_call.1} parent=108 // pred_region
          _
        $region113: #{tpu_custom_call.1} parent=108 // pred_fallthru
          _
        %p520 = scmp.lt.s32.totalorder %s31, 1
        %s521 = scalar_select %p520, %s31, 1
        %p522 = scmp.lt.s32.totalorder %s32, 1
        %s523 = scalar_select %p522, %s32, 1
        %s524 = smul.addr %s521, 2
        %s525 = sadd.s32 %s523, %s524
        %s526 = smul.addr %s525, 4
        %s527 = scalar_lea.vmem %s0, %s526
        %p528 = pneg %p62
        %p529 = pneg %p59
        %p530 = scmp.lt.s32.totalorder %s31, 1
        %s531 = scalar_select %p530, %s31, 1
        %s532 = smul.addr %s531, 2
        %s533 = smul.addr %s532, 4
        %s534 = scalar_lea.vmem %s1, %s533
        %p535 = pneg %p88
        %p536 = pneg %p85
        %p537 = scmp.lt.s32.totalorder %s31, 1
        %s538 = scalar_select %p537, %s31, 1
        %s539 = smul.addr %s538, 4
        %s540 = smul.addr %s539, 4
        %s541 = scalar_lea.vmem %s2, %s540
        %p542 = pneg %p114
        %p543 = pneg %p111
        %s544 = sand.u32 %s127, 1
        %s545 = sand.u32 %s127, 1
        %s546 = smul.addr %s545, 32
        %s547 = scalar_lea.vmem [#allocation2], %s546
        %p548 = pneg %p140
        %p549 = pneg %p137
        %p550 = pneg %p161
        %p551 = pneg %p158
        %p552 = pneg %p182
        %p553 = pneg %p179
        %p554 = pneg %p203
        %p555 = pneg %p200
        %p556 = pneg %p224
        %p557 = pneg %p221
        %p558 = pneg %p245
        %p559 = pneg %p242
        %p560 = pneg %p266
        %p561 = pneg %p263
        %p562 = pneg %p287
        %p563 = pneg %p284
        %p564 = pneg %p308
        %p565 = pneg %p305
        %p566 = pneg %p329
        %p567 = pneg %p326
        %p568 = pneg %p357
        %p569 = pneg %p354
        %s570 = sand.u32 %s344, 1
        %s571 = scalar_lea.sflag [#allocation4], %s570
        %s572 = sand.u32 %s344, 1
        %s573 = smul.addr %s572, 16
        %s574 = scalar_lea.vmem [#allocation3], %s573
        %p575 = scmp.lt.s32.totalorder %s31, 1
        %s576 = scalar_select %p575, %s31, 1
        %p577 = scmp.lt.s32.totalorder %s32, 1
        %s578 = scalar_select %p577, %s32, 1
        %s579 = smul.addr %s576, 2
        %s580 = sadd.s32 %s578, %s579
        %s581 = smul.addr %s580, 4
        %s582 = scalar_lea.vmem %s0, %s581
        %p583 = scmp.lt.s32.totalorder %s31, 1
        %s584 = scalar_select %p583, %s31, 1
        %s585 = smul.addr %s584, 2
        %s586 = smul.addr %s585, 4
        %s587 = scalar_lea.vmem %s1, %s586
        %p588 = scmp.lt.s32.totalorder %s31, 1
        %s589 = scalar_select %p588, %s31, 1
        %s590 = smul.addr %s589, 4
        %s591 = smul.addr %s590, 4
        %s592 = scalar_lea.vmem %s2, %s591
        %v594 = vld [vmem:[%s11] sm:$0xf]
        %v595 = vld [vmem:[%s11 + $0x4] sm:$0xf]
        %v596 = vld [vmem:[%s12] sm:$0xff]
        %v597 = vld [vmem:[%s12 + $0x8] sm:$0xff]
        %v598 = vld [vmem:[%s582] sm:$0xf]
        %v599 = vld [vmem:[%s5] sm:$0xf]
        %v600 = vld [vmem:[%s5 + $0x4] sm:$0xf]
        %v601 = vld [vmem:[%s6] sm:$0xff]
        %v602 = vld [vmem:[%s6 + $0x8] sm:$0xff]
        %604 = vset.pattern.permute.xlu0 0
        %605 = vperm.xlu0 %604, %v601
        %v606 = vpop.permute.xlu0 %605
        %609 = vset.pattern.permute.xlu0 0
        %610 = vperm.xlu0 %609, %v602
        %v611 = vpop.permute.xlu0 %610
        %v615 = vunpack.c.l.b16 %v599
        %v616 = vunpack.c.l.b16 %v600
        %v617 = vpack.c.b16 %v616, %v615
        %vm618 = vcmask 64512
        %v620 = vsel %vm618, %v617, 0
        %vm622 = vcmask 1043456
        %v624 = vsel %vm622, %v598, 0
        %626 = vmatprep.subr.bf16.mxu0 0
        %627 = vmatpush1.bf16.msra.mxu0 %v624
        %628 = vmatprep.subr.bf16.mxu0 0
        %629 = vmatpush1.bf16.msra.mxu0 0
        %630 = vmatprep.subr.bf16.mxu0 0
        %631 = vmatpush1.bf16.msra.mxu0 0
        %632 = vmatprep.subr.bf16.mxu0 0
        %633 = vmatpush1.bf16.msra.mxu0 0
        %634 = vmatprep.subr.bf16.mxu0 0
        %635 = vmatpush1.bf16.msra.mxu0 0
        %636 = vmatprep.subr.bf16.mxu0 0
        %637 = vmatpush1.bf16.msra.mxu0 0
        %638 = vmatprep.subr.bf16.mxu0 0
        %639 = vmatpush1.bf16.msra.mxu0 0
        %640 = vmatprep.subr.bf16.mxu0 0
        %641 = vmatpush1.bf16.msra.mxu0 0
        %642 = vmatprep.subr.bf16.mxu0 0
        %643 = vmatpush1.bf16.msra.mxu0 0
        %644 = vmatprep.subr.bf16.mxu0 0
        %645 = vmatpush1.bf16.msra.mxu0 0
        %646 = vmatprep.subr.bf16.mxu0 0
        %647 = vmatpush1.bf16.msra.mxu0 0
        %648 = vmatprep.subr.bf16.mxu0 0
        %649 = vmatpush1.bf16.msra.mxu0 0
        %650 = vmatprep.subr.bf16.mxu0 0
        %651 = vmatpush1.bf16.msra.mxu0 0
        %652 = vmatprep.subr.bf16.mxu0 0
        %653 = vmatpush1.bf16.msra.mxu0 0
        %654 = vmatprep.subr.bf16.mxu0 0
        %655 = vmatpush1.bf16.msra.mxu0 0
        %656 = vmatprep.subr.bf16.mxu0 0
        %657 = vmatpush1.bf16.msra.mxu0 0
        %658 = vmatprep.mubr.bf16.mxu0 0
        %659 = vmatmul.mubr.bf16.gmra.mrb[0].mxu0 %v620
        %v660 = vpop.f32.mrb[0].mxu0
        %v661 = vadd.f32 %v606, %v660
        %v662 = vpop.f32.mrb[0].mxu0
        %v663 = vpop.f32.mrb[0].mxu0
        %v664 = vadd.f32 %v611, %v663
        %v665 = vpop.f32.mrb[0].mxu0
        %666 = vdwg.mxu0
        %v667 = vxor.u32 %v661, 2147483648
        %v668 = vxor.u32 %v664, 2147483648
        %v669 = vmul.f32 %v667, 1.442695
        %v670 = vpow.pop %v669
        %v671 = vmul.f32 %v668, 1.442695
        %v672 = vpow.pop %v671
        %v673 = vadd.f32 %v670, 1.0
        %v674 = vadd.f32 %v672, 1.0
        %v675 = vrcp.pop %v673
        %v676 = vmul.f32 1.0, %v675
        %v677 = vrcp.pop %v674
        %v678 = vmul.f32 1.0, %v677
        %v679 = vmul.f32 %v661, %v676
        %v680 = vmul.f32 %v664, %v678
        %v681 = vpack.c.bf16 %v680, %v679
        %683 = vset.pattern.permute.xlu0 0
        %684 = vperm.xlu0 %683, %v596
        %v685 = vpop.permute.xlu0 %684
        %688 = vset.pattern.permute.xlu0 0
        %689 = vperm.xlu0 %688, %v597
        %v690 = vpop.permute.xlu0 %689
        %v694 = vunpack.c.l.b16 %v594
        %v695 = vunpack.c.l.b16 %v595
        %v696 = vpack.c.b16 %v695, %v694
        %vm697 = vcmask 130048
        %v699 = vsel %vm697, %v696, 0
        %701 = vmatprep.subr.bf16.mxu0 0
        %702 = vmatpush1.bf16.msra.mxu0 %v681
        %703 = vmatprep.subr.bf16.mxu0 0
        %704 = vmatpush1.bf16.msra.mxu0 0
        %705 = vmatprep.subr.bf16.mxu0 0
        %706 = vmatpush1.bf16.msra.mxu0 0
        %707 = vmatprep.subr.bf16.mxu0 0
        %708 = vmatpush1.bf16.msra.mxu0 0
        %709 = vmatprep.subr.bf16.mxu0 0
        %710 = vmatpush1.bf16.msra.mxu0 0
        %711 = vmatprep.subr.bf16.mxu0 0
        %712 = vmatpush1.bf16.msra.mxu0 0
        %713 = vmatprep.subr.bf16.mxu0 0
        %714 = vmatpush1.bf16.msra.mxu0 0
        %715 = vmatprep.subr.bf16.mxu0 0
        %716 = vmatpush1.bf16.msra.mxu0 0
        %717 = vmatprep.subr.bf16.mxu0 0
        %718 = vmatpush1.bf16.msra.mxu0 0
        %719 = vmatprep.subr.bf16.mxu0 0
        %720 = vmatpush1.bf16.msra.mxu0 0
        %721 = vmatprep.subr.bf16.mxu0 0
        %722 = vmatpush1.bf16.msra.mxu0 0
        %723 = vmatprep.subr.bf16.mxu0 0
        %724 = vmatpush1.bf16.msra.mxu0 0
        %725 = vmatprep.subr.bf16.mxu0 0
        %726 = vmatpush1.bf16.msra.mxu0 0
        %727 = vmatprep.subr.bf16.mxu0 0
        %728 = vmatpush1.bf16.msra.mxu0 0
        %729 = vmatprep.subr.bf16.mxu0 0
        %730 = vmatpush1.bf16.msra.mxu0 0
        %731 = vmatprep.subr.bf16.mxu0 0
        %732 = vmatpush1.bf16.msra.mxu0 0
        %733 = vmatprep.mubr.bf16.mxu0 0
        %734 = vmatmul.mubr.bf16.gmra.mrb[0].mxu0 %v699
        %v735 = vpop.f32.mrb[0].mxu0
        %v736 = vadd.f32 %v685, %v735
        %v737 = vpop.f32.mrb[0].mxu0
        %v738 = vpop.f32.mrb[0].mxu0
        %v739 = vadd.f32 %v690, %v738
        %v740 = vpop.f32.mrb[0].mxu0
        %741 = vdwg.mxu0
        %v742 = vmul.f32 %v736, 0.1
        %v743 = vmul.f32 %v739, 0.1
        %v744 = vmax.f32 %v736, %v742
        %v745 = vmax.f32 %v739, %v743
        %v746 = vld [vmem:[%s587] sm:$0xf]
        %v747 = vld [vmem:[%s587 + $0x4] sm:$0xf]
        %v748 = vld [vmem:[%s7] sm:$0xf]
        %v749 = vld [vmem:[%s7 + $0x4] sm:$0xf]
        %v750 = vld [vmem:[%s8] sm:$0xff]
        %v751 = vld [vmem:[%s8 + $0x8] sm:$0xff]
        %753 = vset.pattern.permute.xlu0 0
        %754 = vperm.xlu0 %753, %v750
        %v755 = vpop.permute.xlu0 %754
        %758 = vset.pattern.permute.xlu0 0
        %759 = vperm.xlu0 %758, %v751
        %v760 = vpop.permute.xlu0 %759
        %v764 = vunpack.c.l.b16 %v748
        %v765 = vunpack.c.l.b16 %v749
        %v766 = vpack.c.b16 %v765, %v764
        %v769 = vunpack.c.l.b16 %v746
        %v770 = vunpack.c.l.b16 %v747
        %v771 = vpack.c.b16 %v770, %v769
        %v774 = vsel %vm697, %v766, 0
        %776 = vmatprep.subr.bf16.mxu0 0
        %777 = vmatpush1.bf16.msra.mxu0 %v771
        %778 = vmatprep.subr.bf16.mxu0 0
        %779 = vmatpush1.bf16.msra.mxu0 0
        %780 = vmatprep.subr.bf16.mxu0 0
        %781 = vmatpush1.bf16.msra.mxu0 0
        %782 = vmatprep.subr.bf16.mxu0 0
        %783 = vmatpush1.bf16.msra.mxu0 0
        %784 = vmatprep.subr.bf16.mxu0 0
        %785 = vmatpush1.bf16.msra.mxu0 0
        %786 = vmatprep.subr.bf16.mxu0 0
        %787 = vmatpush1.bf16.msra.mxu0 0
        %788 = vmatprep.subr.bf16.mxu0 0
        %789 = vmatpush1.bf16.msra.mxu0 0
        %790 = vmatprep.subr.bf16.mxu0 0
        %791 = vmatpush1.bf16.msra.mxu0 0
        %792 = vmatprep.subr.bf16.mxu0 0
        %793 = vmatpush1.bf16.msra.mxu0 0
        %794 = vmatprep.subr.bf16.mxu0 0
        %795 = vmatpush1.bf16.msra.mxu0 0
        %796 = vmatprep.subr.bf16.mxu0 0
        %797 = vmatpush1.bf16.msra.mxu0 0
        %798 = vmatprep.subr.bf16.mxu0 0
        %799 = vmatpush1.bf16.msra.mxu0 0
        %800 = vmatprep.subr.bf16.mxu0 0
        %801 = vmatpush1.bf16.msra.mxu0 0
        %802 = vmatprep.subr.bf16.mxu0 0
        %803 = vmatpush1.bf16.msra.mxu0 0
        %804 = vmatprep.subr.bf16.mxu0 0
        %805 = vmatpush1.bf16.msra.mxu0 0
        %806 = vmatprep.subr.bf16.mxu0 0
        %807 = vmatpush1.bf16.msra.mxu0 0
        %808 = vmatprep.mubr.bf16.mxu0 0
        %809 = vmatmul.mubr.bf16.gmra.mrb[0].mxu0 %v774
        %v810 = vpop.f32.mrb[0].mxu0
        %v811 = vadd.f32 %v755, %v810
        %v812 = vpop.f32.mrb[0].mxu0
        %v813 = vpop.f32.mrb[0].mxu0
        %v814 = vadd.f32 %v760, %v813
        %v815 = vpop.f32.mrb[0].mxu0
        %816 = vdwg.mxu0
        %v817 = vxor.u32 %v811, 2147483648
        %v818 = vxor.u32 %v814, 2147483648
        %v819 = vmul.f32 %v817, 1.442695
        %v820 = vpow.pop %v819
        %v821 = vmul.f32 %v818, 1.442695
        %v822 = vpow.pop %v821
        %v823 = vadd.f32 %v820, 1.0
        %v824 = vadd.f32 %v822, 1.0
        %v825 = vrcp.pop %v823
        %v826 = vmul.f32 1.0, %v825
        %v827 = vrcp.pop %v824
        %v828 = vmul.f32 1.0, %v827
        %v829 = vmul.f32 %v811, %v826
        %v830 = vmul.f32 %v814, %v828
        %v831 = vpack.c.bf16 %v830, %v829
        %832 = vmatprep.subr.bf16.mxu0 0
        %833 = vmatpush1.bf16.msra.mxu0 %v831
        %834 = vmatprep.subr.bf16.mxu0 0
        %835 = vmatpush1.bf16.msra.mxu0 0
        %836 = vmatprep.subr.bf16.mxu0 0
        %837 = vmatpush1.bf16.msra.mxu0 0
        %838 = vmatprep.subr.bf16.mxu0 0
        %839 = vmatpush1.bf16.msra.mxu0 0
        %840 = vmatprep.subr.bf16.mxu0 0
        %841 = vmatpush1.bf16.msra.mxu0 0
        %842 = vmatprep.subr.bf16.mxu0 0
        %843 = vmatpush1.bf16.msra.mxu0 0
        %844 = vmatprep.subr.bf16.mxu0 0
        %845 = vmatpush1.bf16.msra.mxu0 0
        %846 = vmatprep.subr.bf16.mxu0 0
        %847 = vmatpush1.bf16.msra.mxu0 0
        %848 = vmatprep.subr.bf16.mxu0 0
        %849 = vmatpush1.bf16.msra.mxu0 0
        %850 = vmatprep.subr.bf16.mxu0 0
        %851 = vmatpush1.bf16.msra.mxu0 0
        %852 = vmatprep.subr.bf16.mxu0 0
        %853 = vmatpush1.bf16.msra.mxu0 0
        %854 = vmatprep.subr.bf16.mxu0 0
        %855 = vmatpush1.bf16.msra.mxu0 0
        %856 = vmatprep.subr.bf16.mxu0 0
        %857 = vmatpush1.bf16.msra.mxu0 0
        %858 = vmatprep.subr.bf16.mxu0 0
        %859 = vmatpush1.bf16.msra.mxu0 0
        %860 = vmatprep.subr.bf16.mxu0 0
        %861 = vmatpush1.bf16.msra.mxu0 0
        %862 = vmatprep.subr.bf16.mxu0 0
        %863 = vmatpush1.bf16.msra.mxu0 0
        %864 = vmatprep.mubr.bf16.mxu0 0
        %865 = vmatmul.mubr.bf16.gmra.mrb[0].mxu0 %v699
        %v866 = vpop.f32.mrb[0].mxu0
        %v867 = vadd.f32 %v685, %v866
        %v868 = vpop.f32.mrb[0].mxu0
        %v869 = vpop.f32.mrb[0].mxu0
        %v870 = vadd.f32 %v690, %v869
        %v871 = vpop.f32.mrb[0].mxu0
        %872 = vdwg.mxu0
        %v873 = vmul.f32 %v867, 0.1
        %v874 = vmul.f32 %v870, 0.1
        %v875 = vmax.f32 %v867, %v873
        %v876 = vmax.f32 %v870, %v874
        %v877 = vld [vmem:[%s592] sm:$0xf]
        %v878 = vld [vmem:[%s592 + $0x4] sm:$0xf]
        %v879 = vld [vmem:[%s592 + $0x8] sm:$0xf]
        %v880 = vld [vmem:[%s592 + $0xc] sm:$0xf]
        %v881 = vld [vmem:[%s9] sm:$0xf]
        %v882 = vld [vmem:[%s9 + $0x4] sm:$0xf]
        %v883 = vld [vmem:[%s10] sm:$0xff]
        %v884 = vld [vmem:[%s10 + $0x8] sm:$0xff]
        %886 = vset.pattern.permute.xlu0 0
        %887 = vperm.xlu0 %886, %v883
        %v888 = vpop.permute.xlu0 %887
        %891 = vset.pattern.permute.xlu0 0
        %892 = vperm.xlu0 %891, %v884
        %v893 = vpop.permute.xlu0 %892
        %v897 = vunpack.c.l.b16 %v881
        %v898 = vunpack.c.l.b16 %v882
        %v899 = vpack.c.b16 %v898, %v897
        %v904 = vunpack.c.l.b16 %v877
        %v905 = vunpack.c.l.b16 %v878
        %v906 = vunpack.c.l.b16 %v879
        %v907 = vunpack.c.l.b16 %v880
        %v908 = vpack.c.b16 %v905, %v904
        %v909 = vpack.c.b16 %v907, %v906
        %vm912 = vcmask 261120
        %v914 = vsel %vm912, %v899, 0
        %916 = vmatprep.subr.bf16.mxu0 0
        %917 = vmatpush1.bf16.msra.mxu0 %v908
        %918 = vmatprep.subr.bf16.mxu0 0
        %919 = vmatpush1.bf16.msra.mxu0 %v909
        %920 = vmatprep.subr.bf16.mxu0 0
        %921 = vmatpush1.bf16.msra.mxu0 0
        %922 = vmatprep.subr.bf16.mxu0 0
        %923 = vmatpush1.bf16.msra.mxu0 0
        %924 = vmatprep.subr.bf16.mxu0 0
        %925 = vmatpush1.bf16.msra.mxu0 0
        %926 = vmatprep.subr.bf16.mxu0 0
        %927 = vmatpush1.bf16.msra.mxu0 0
        %928 = vmatprep.subr.bf16.mxu0 0
        %929 = vmatpush1.bf16.msra.mxu0 0
        %930 = vmatprep.subr.bf16.mxu0 0
        %931 = vmatpush1.bf16.msra.mxu0 0
        %932 = vmatprep.subr.bf16.mxu0 0
        %933 = vmatpush1.bf16.msra.mxu0 0
        %934 = vmatprep.subr.bf16.mxu0 0
        %935 = vmatpush1.bf16.msra.mxu0 0
        %936 = vmatprep.subr.bf16.mxu0 0
        %937 = vmatpush1.bf16.msra.mxu0 0
        %938 = vmatprep.subr.bf16.mxu0 0
        %939 = vmatpush1.bf16.msra.mxu0 0
        %940 = vmatprep.subr.bf16.mxu0 0
        %941 = vmatpush1.bf16.msra.mxu0 0
        %942 = vmatprep.subr.bf16.mxu0 0
        %943 = vmatpush1.bf16.msra.mxu0 0
        %944 = vmatprep.subr.bf16.mxu0 0
        %945 = vmatpush1.bf16.msra.mxu0 0
        %946 = vmatprep.subr.bf16.mxu0 0
        %947 = vmatpush1.bf16.msra.mxu0 0
        %948 = vmatprep.mubr.bf16.mxu0 0
        %949 = vmatmul.mubr.bf16.gmra.mrb[0].mxu0 %v914
        %v950 = vpop.f32.mrb[0].mxu0
        %v951 = vadd.f32 %v888, %v950
        %v952 = vpop.f32.mrb[0].mxu0
        %v953 = vpop.f32.mrb[0].mxu0
        %v954 = vadd.f32 %v893, %v953
        %v955 = vpop.f32.mrb[0].mxu0
        %956 = vdwg.mxu0
        %v957 = vxor.u32 %v951, 2147483648
        %v958 = vxor.u32 %v954, 2147483648
        %v959 = vmul.f32 %v957, 1.442695
        %v960 = vpow.pop %v959
        %v961 = vmul.f32 %v958, 1.442695
        %v962 = vpow.pop %v961
        %v963 = vadd.f32 %v960, 1.0
        %v964 = vadd.f32 %v962, 1.0
        %v965 = vrcp.pop %v963
        %v966 = vmul.f32 1.0, %v965
        %v967 = vrcp.pop %v964
        %v968 = vmul.f32 1.0, %v967
        %v969 = vmul.f32 %v951, %v966
        %v970 = vmul.f32 %v954, %v968
        %v971 = vpack.c.bf16 %v970, %v969
        %972 = vmatprep.subr.bf16.mxu0 0
        %973 = vmatpush1.bf16.msra.mxu0 %v971
        %974 = vmatprep.subr.bf16.mxu0 0
        %975 = vmatpush1.bf16.msra.mxu0 0
        %976 = vmatprep.subr.bf16.mxu0 0
        %977 = vmatpush1.bf16.msra.mxu0 0
        %978 = vmatprep.subr.bf16.mxu0 0
        %979 = vmatpush1.bf16.msra.mxu0 0
        %980 = vmatprep.subr.bf16.mxu0 0
        %981 = vmatpush1.bf16.msra.mxu0 0
        %982 = vmatprep.subr.bf16.mxu0 0
        %983 = vmatpush1.bf16.msra.mxu0 0
        %984 = vmatprep.subr.bf16.mxu0 0
        %985 = vmatpush1.bf16.msra.mxu0 0
        %986 = vmatprep.subr.bf16.mxu0 0
        %987 = vmatpush1.bf16.msra.mxu0 0
        %988 = vmatprep.subr.bf16.mxu0 0
        %989 = vmatpush1.bf16.msra.mxu0 0
        %990 = vmatprep.subr.bf16.mxu0 0
        %991 = vmatpush1.bf16.msra.mxu0 0
        %992 = vmatprep.subr.bf16.mxu0 0
        %993 = vmatpush1.bf16.msra.mxu0 0
        %994 = vmatprep.subr.bf16.mxu0 0
        %995 = vmatpush1.bf16.msra.mxu0 0
        %996 = vmatprep.subr.bf16.mxu0 0
        %997 = vmatpush1.bf16.msra.mxu0 0
        %998 = vmatprep.subr.bf16.mxu0 0
        %999 = vmatpush1.bf16.msra.mxu0 0
        %1000 = vmatprep.subr.bf16.mxu0 0
        %1001 = vmatpush1.bf16.msra.mxu0 0
        %1002 = vmatprep.subr.bf16.mxu0 0
        %1003 = vmatpush1.bf16.msra.mxu0 0
        %1004 = vmatprep.mubr.bf16.mxu0 0
        %1005 = vmatmul.mubr.bf16.gmra.mrb[0].mxu0 %v699
        %v1006 = vpop.f32.mrb[0].mxu0
        %v1007 = vadd.f32 %v685, %v1006
        %v1008 = vpop.f32.mrb[0].mxu0
        %v1009 = vpop.f32.mrb[0].mxu0
        %v1010 = vadd.f32 %v690, %v1009
        %v1011 = vpop.f32.mrb[0].mxu0
        %1012 = vdwg.mxu0
        %v1013 = vmul.f32 %v1007, 0.1
        %v1014 = vmul.f32 %v1010, 0.1
        %v1015 = vmax.f32 %v1007, %v1013
        %v1016 = vmax.f32 %v1010, %v1014
        %v1017 = vpack.c.bf16 %v1016, %v1015
        %v1018 = vld [vmem:[%s4] sm:$0xf]
        %v1019 = vld [vmem:[%s4 + $0x4] sm:$0xf]
        %v1022 = vunpack.c.l.b16 %v1018
        %v1023 = vunpack.c.l.b16 %v1019
        %v1024 = vpack.c.b16 %v1023, %v1022
        %v1027 = vsel %vm697, %v1017, 0
        %1029 = vmatprep.subr.bf16.mxu0 0
        %1030 = vmatpush1.bf16.msra.mxu0 %v1024
        %1031 = vmatprep.subr.bf16.mxu0 0
        %1032 = vmatpush1.bf16.msra.mxu0 0
        %1033 = vmatprep.subr.bf16.mxu0 0
        %1034 = vmatpush1.bf16.msra.mxu0 0
        %1035 = vmatprep.subr.bf16.mxu0 0
        %1036 = vmatpush1.bf16.msra.mxu0 0
        %1037 = vmatprep.subr.bf16.mxu0 0
        %1038 = vmatpush1.bf16.msra.mxu0 0
        %1039 = vmatprep.subr.bf16.mxu0 0
        %1040 = vmatpush1.bf16.msra.mxu0 0
        %1041 = vmatprep.subr.bf16.mxu0 0
        %1042 = vmatpush1.bf16.msra.mxu0 0
        %1043 = vmatprep.subr.bf16.mxu0 0
        %1044 = vmatpush1.bf16.msra.mxu0 0
        %1045 = vmatprep.subr.bf16.mxu0 0
        %1046 = vmatpush1.bf16.msra.mxu0 0
        %1047 = vmatprep.subr.bf16.mxu0 0
        %1048 = vmatpush1.bf16.msra.mxu0 0
        %1049 = vmatprep.subr.bf16.mxu0 0
        %1050 = vmatpush1.bf16.msra.mxu0 0
        %1051 = vmatprep.subr.bf16.mxu0 0
        %1052 = vmatpush1.bf16.msra.mxu0 0
        %1053 = vmatprep.subr.bf16.mxu0 0
        %1054 = vmatpush1.bf16.msra.mxu0 0
        %1055 = vmatprep.subr.bf16.mxu0 0
        %1056 = vmatpush1.bf16.msra.mxu0 0
        %1057 = vmatprep.subr.bf16.mxu0 0
        %1058 = vmatpush1.bf16.msra.mxu0 0
        %1059 = vmatprep.subr.bf16.mxu0 0
        %1060 = vmatpush1.bf16.msra.mxu0 0
        %1061 = vmatprep.mubr.bf16.mxu0 0
        %1062 = vmatmul.mubr.bf16.gmra.mrb[0].mxu0 %v1027
        %v1063 = vpop.f32.mrb[0].mxu0
        %v1064 = vadd.f32 0.0, %v1063
        %v1065 = vpop.f32.mrb[0].mxu0
        %v1066 = vpop.f32.mrb[0].mxu0
        %v1067 = vadd.f32 0.0, %v1066
        %v1068 = vpop.f32.mrb[0].mxu0
        %1069 = vdwg.mxu0
        %v1070 = vmax.f32 %v875, %v1064
        %v1071 = vmax.f32 %v876, %v1067
        %v1072 = vpack.c.bf16 %v1071, %v1070
        %v1073 = vld [vmem:[%s516] sm:$0xf]
        %v1074 = vld [vmem:[%s516 + $0x4] sm:$0xf]
        %v1075 = vld [vmem:[%s516 + $0x8] sm:$0xf]
        %v1076 = vld [vmem:[%s516 + $0xc] sm:$0xf]
        %v1077 = vld [vmem:[%s516 + $0x10] sm:$0xf]
        %v1078 = vld [vmem:[%s516 + $0x14] sm:$0xf]
        %v1079 = vld [vmem:[%s516 + $0x18] sm:$0xf]
        %v1080 = vld [vmem:[%s516 + $0x1c] sm:$0xf]
        %v1089 = vunpack.c.l.b16 %v1073
        %v1090 = vunpack.c.l.b16 %v1074
        %v1091 = vunpack.c.l.b16 %v1075
        %v1092 = vunpack.c.l.b16 %v1076
        %v1093 = vunpack.c.l.b16 %v1077
        %v1094 = vunpack.c.l.b16 %v1078
        %v1095 = vunpack.c.l.b16 %v1079
        %v1096 = vunpack.c.l.b16 %v1080
        %v1097 = vpack.c.b16 %v1090, %v1089
        %v1098 = vpack.c.b16 %v1092, %v1091
        %v1099 = vpack.c.b16 %v1094, %v1093
        %v1100 = vpack.c.b16 %v1096, %v1095
        %vm1105 = vcmask 523264
        %v1107 = vsel %vm1105, %v1072, 0
        %1109 = vmatprep.subr.bf16.mxu0 0
        %1110 = vmatpush1.bf16.msra.mxu0 %v1097
        %1111 = vmatprep.subr.bf16.mxu0 0
        %1112 = vmatpush1.bf16.msra.mxu0 %v1098
        %1113 = vmatprep.subr.bf16.mxu0 0
        %1114 = vmatpush1.bf16.msra.mxu0 %v1099
        %1115 = vmatprep.subr.bf16.mxu0 0
        %1116 = vmatpush1.bf16.msra.mxu0 %v1100
        %1117 = vmatprep.subr.bf16.mxu0 0
        %1118 = vmatpush1.bf16.msra.mxu0 0
        %1119 = vmatprep.subr.bf16.mxu0 0
        %1120 = vmatpush1.bf16.msra.mxu0 0
        %1121 = vmatprep.subr.bf16.mxu0 0
        %1122 = vmatpush1.bf16.msra.mxu0 0
        %1123 = vmatprep.subr.bf16.mxu0 0
        %1124 = vmatpush1.bf16.msra.mxu0 0
        %1125 = vmatprep.subr.bf16.mxu0 0
        %1126 = vmatpush1.bf16.msra.mxu0 0
        %1127 = vmatprep.subr.bf16.mxu0 0
        %1128 = vmatpush1.bf16.msra.mxu0 0
        %1129 = vmatprep.subr.bf16.mxu0 0
        %1130 = vmatpush1.bf16.msra.mxu0 0
        %1131 = vmatprep.subr.bf16.mxu0 0
        %1132 = vmatpush1.bf16.msra.mxu0 0
        %1133 = vmatprep.subr.bf16.mxu0 0
        %1134 = vmatpush1.bf16.msra.mxu0 0
        %1135 = vmatprep.subr.bf16.mxu0 0
        %1136 = vmatpush1.bf16.msra.mxu0 0
        %1137 = vmatprep.subr.bf16.mxu0 0
        %1138 = vmatpush1.bf16.msra.mxu0 0
        %1139 = vmatprep.subr.bf16.mxu0 0
        %1140 = vmatpush1.bf16.msra.mxu0 0
        %1141 = vmatprep.mubr.bf16.mxu0 0
        %1142 = vmatmul.mubr.bf16.gmra.mrb[0].mxu0 %v1107
        %v1143 = vpop.f32.mrb[0].mxu0
        %v1144 = vadd.f32 0.0, %v1143
        %v1145 = vpop.f32.mrb[0].mxu0
        %v1146 = vpop.f32.mrb[0].mxu0
        %v1147 = vadd.f32 0.0, %v1146
        %v1148 = vpop.f32.mrb[0].mxu0
        %1149 = vdwg.mxu0
        %v1150 = vmax.f32 %v744, %v1144
        %v1151 = vmax.f32 %v745, %v1147
        %1152 = vst [vmem:[%s574] sm:$0xff] %v1150
        %1153 = vst [vmem:[%s574 + $0x8] sm:$0xff] %v1151
        %s1154 = sand.u32 %s344, 1
        %s1155 = scalar_lea.sflag [#allocation4], %s1154
        %s1156 = sand.u32 %s344, 1
        %s1157 = smul.addr %s1156, 16
        %s1158 = scalar_lea.vmem [#allocation3], %s1157
        // Predicated region
        $region114: #{tpu_custom_call.1} parent=108 // pred_check
          %p1159 = pneg %p354
        $region115: #{tpu_custom_call.1} parent=108 // pred_check_branch
          %1161 = sbr.rel (%p1159) target = $region117
        $region116: #{tpu_custom_call.1} parent=108 // pred_region
          %s1163 = ssub.s32 256, 256
          %1164 = vsyncadd %s1155, %s1163
          %s1165 = smul.addr %s31, 4
          %s1166 = sadd.s32 %s32, %s1165
          %s1167 = smul.addr %s1166, 128
          %s1168 = scalar_lea.hbm %s13, %s1167
          %s1169 = sshll.u32 %s1158, 4
          %s1170 = int_to_ptr.vmem [resolvable:$true] %s1169
          %1175 = dma.vmem_to_hbm [thread:$0]  %s1170, 256, %s1168, %s1155, 128, 256, 8
        $region117: #{tpu_custom_call.1} parent=108 // pred_fallthru
          _
      $region109: #{tpu_custom_call.1} parent=5 // pred_fallthru
        _
      %p1176 = scmp.le.s32.totalorder 2, %s22
      // Predicated region
      $region118: #{tpu_custom_call.1} parent=5 // pred_check
        %p1177 = pneg %p1176
      $region119: #{tpu_custom_call.1} parent=5 // pred_check_branch
        %1179 = sbr.rel (%p1177) target = $region121
      $region120: #{tpu_custom_call.1} parent=5 // pred_region
        %s1180 = ssub.s32 %s22, 2
        // Predicated region
        $region122: #{tpu_custom_call.1} parent=120 // pred_check
          %p1181 = pneg %p360
        $region123: #{tpu_custom_call.1} parent=120 // pred_check_branch
          %1183 = sbr.rel (%p1181) target = $region125
        $region124: #{tpu_custom_call.1} parent=120 // pred_region
          %s1184 = sand.u32 %s345, 1
          %s1185 = scalar_lea.sflag [#allocation4], %s1184
          %s1186 = sand.u32 %s345, 1
          %s1187 = smul.addr %s1186, 16
          %s1188 = scalar_lea.vmem [#allocation3], %s1187
          %1189 = dma.done %s1185, 256
        $region125: #{tpu_custom_call.1} parent=120 // pred_fallthru
          _
      $region121: #{tpu_custom_call.1} parent=5 // pred_fallthru
        _
    $region6: #{tpu_custom_call.1} parent=1 // loop_footer
      %s26 = sadd.s32 1, %s22
    $region7: #{tpu_custom_call.1} parent=1 // loop_footer_branch
      %21 = sbr.rel target = $region3
    $region8: #{tpu_custom_call.1} parent=1 // loop_exit
      _
    %1190 = vsyncpa [#allocation4], 1
    %s1191 = scalar_lea.sflag [#allocation4], 1
    %1192 = vsyncpa %s1191, 1

</llo_original>
